<compile_context>
chip_gen: v5e
topology: v5e:2x2
jax: 0.10.0
libtpu: 0.0.40
codegen_flags: <defaults>
</compile_context>

<pallas_src>
import jax
import jax.numpy as jnp
from jax import lax
from jax.experimental import pallas as pl
from jax.experimental.pallas import tpu as pltpu

HEAD_W = 128  # lane-dense width for the MLP head weights and the output tile


# ------------------------- parameter packing -------------------------

def pack_params(p, input_dim, lstm_units, dense_units):
    """Coalesce all weights/biases into one (R, 8H) f32 array (single DMA).

    Every block is zero-padded to 8H lanes and to an 8-row boundary so the
    in-kernel static slices are tile aligned.  The head weights get 128
    contraction rows / lanes so the head path never lane-slices below 128.
    Returns (packed, {name: row_offset}).
    """
    H, DU = lstm_units, dense_units
    D = input_dim
    G4, G8 = 4 * H, 8 * H
    DU2 = DU // 2
    assert DU <= HEAD_W and DU2 <= HEAD_W and HEAD_W <= G8 and D <= G8

    parts, offs = [], {}

    def add(name, w, min_rows=0):
        w = jnp.asarray(w, jnp.float32)
        r, c = w.shape
        assert c <= G8
        rp = ((max(r, min_rows) + 7) // 8) * 8
        w = jnp.pad(w, ((0, rp - r), (0, G8 - c)))
        offs[name] = sum(q.shape[0] for q in parts)
        parts.append(w)

    # Fused stationary-RHS recurrent weight:
    #   [h1_t, h2_{t-1}] @ [[whh1, wih2], [0, whh2]]
    #     lanes [0:4H)  -> h1_t @ whh1              (recurrent part of gates1, t+1)
    #     lanes [4H:8H) -> h1_t @ wih2 + h2 @ whh2  (gates2 at step t, minus bias)
    wcomb = jnp.concatenate(
        [jnp.concatenate([p["whh1"], p["wih2"]], axis=1),
         jnp.concatenate([jnp.zeros((H, G4), jnp.float32), p["whh2"]], axis=1)],
        axis=0)                                               # (2H, 8H)

    add("wih1", p["wih1"])                      # (D, 4H)
    add("wcomb", wcomb)                         # (2H, 8H)
    add("wfc1", p["wfc1"])                      # (H, DU)    lanes 0:DU real
    add("wfc2", p["wfc2"], min_rows=HEAD_W)     # (DU, DU2)  128 contraction rows
    add("wfc3", p["wfc3"], min_rows=HEAD_W)     # (DU2, 1)   128 contraction rows
    add("b1", p["b1"])                          # (1, 4H)  (b_ih1 + b_hh1)
    add("b2", p["b2"])                          # (1, 4H)  (b_ih2 + b_hh2)
    add("bfc1", p["bfc1"])                      # (1, DU)
    add("bfc2", p["bfc2"])                      # (1, DU2)
    add("bfc3", p["bfc3"])                      # (1, 1)
    return jnp.concatenate(parts, axis=0), offs


# ------------------------- Pallas kernel -------------------------

def _make_kernel(T, Bp, D, H, DU, offs):
    G4 = 4 * H

    def kernel(x_ref, pw_ref, out_ref, xproj_ref, hcomb_ref):
        # x_ref    : (T*Bp, D)   time-major input, batch padded to Bp
        # pw_ref   : (R, 8H)     packed parameters
        # out_ref  : (Bp, 128)   lane-dense output tile (lane 0 is the prediction)
        # xproj_ref: (T*Bp, 4H)  VMEM scratch: hoisted layer-1 input projection
        # hcomb_ref: (Bp, 2H)    VMEM scratch: [h1_t, h2_{t-1}] combined state

        # ---- hoisted layer-1 input projection (+ folded b_ih1 + b_hh1) ----
        wih1 = pw_ref[offs["wih1"]:offs["wih1"] + D, :G4]            # (D, 4H)
        b1 = pw_ref[offs["b1"]:offs["b1"] + 1, :G4]                  # (1, 4H)
        xproj_ref[...] = (
            jnp.dot(x_ref[...], wih1, preferred_element_type=jnp.float32) + b1)

        # ---- loop-invariants hoisted (JAX does not CSE broadcast_in_dim) ----
        wcomb = pw_ref[offs["wcomb"]:offs["wcomb"] + 2 * H, :]       # (2H, 8H)
        b2b = jnp.broadcast_to(
            pw_ref[offs["b2"]:offs["b2"] + 1, :G4], (Bp, G4))        # (Bp, 4H)

        def gates_to_hc(gates, c):
            # Full-tile activations, then lane slices (PyTorch gate order i,f,g,o).
            sg = jax.nn.sigmoid(gates)
            tg = jnp.tanh(gates)
            i = sg[:, 0 * H:1 * H]
            f = sg[:, 1 * H:2 * H]
            o = sg[:, 3 * H:4 * H]
            g = tg[:, 2 * H:3 * H]
            c_new = f * c + i * g
            return o * jnp.tanh(c_new), c_new

        zeros_h = jnp.zeros((Bp, H), jnp.float32)
        c1, c2, h2 = zeros_h, zeros_h, zeros_h
        rec1 = jnp.zeros((Bp, G4), jnp.float32)          # h1_{-1} @ whh1 == 0
        hcomb_ref[...] = jnp.zeros((Bp, 2 * H), jnp.float32)

        # ---- fully unrolled recurrence (T small & static) ----
        # TODO(synk): switch to lax.fori_loop(..., unroll=2..4) if T grows large.
        for t in range(T):
            g1 = xproj_ref[t * Bp:(t + 1) * Bp, :] + rec1
            h1, c1 = gates_to_hc(g1, c1)
            # dropout1: identity (inference)
            hcomb_ref[:, :H] = h1                         # lanes [0:H)  <- h1_t
            comb = jnp.dot(hcomb_ref[...], wcomb,
                           preferred_element_type=jnp.float32)       # (Bp, 8H)
            rec1 = comb[:, :G4]                           # h1_t @ whh1 (step t+1)
            g2 = comb[:, G4:] + b2b                       # layer-2 gates, step t
            h2, c2 = gates_to_hc(g2, c2)
            # dropout2: identity (inference)
            if t + 1 < T:
                hcomb_ref[:, H:2 * H] = h2                # lanes [H:2H) <- h2_t

        # ---- x[:, -1, :] == h2 ; lane-dense 3-layer MLP head ----
        wfc1 = pw_ref[offs["wfc1"]:offs["wfc1"] + H, :HEAD_W]
        bfc1 = pw_ref[offs["bfc1"]:offs["bfc1"] + 1, :HEAD_W]
        wfc2 = pw_ref[offs["wfc2"]:offs["wfc2"] + HEAD_W, :HEAD_W]
        bfc2 = pw_ref[offs["bfc2"]:offs["bfc2"] + 1, :HEAD_W]
        wfc3 = pw_ref[offs["wfc3"]:offs["wfc3"] + HEAD_W, :HEAD_W]
        bfc3 = pw_ref[offs["bfc3"]:offs["bfc3"] + 1, :HEAD_W]

        z = jnp.maximum(
            jnp.dot(h2, wfc1, preferred_element_type=jnp.float32) + bfc1, 0.0)
        z = jnp.maximum(
            jnp.dot(z, wfc2, preferred_element_type=jnp.float32) + bfc2, 0.0)
        out_ref[...] = (
            jnp.dot(z, wfc3, preferred_element_type=jnp.float32) + bfc3)

    return kernel


# ------------------------- wrapper -------------------------

def make_forward(T, B, input_dim, lstm_units, dense_units, offs):
    D, H, DU = input_dim, lstm_units, dense_units
    Bp = max(8, ((B + 7) // 8) * 8)      # pad batch to full f32 sublane tiles
    kernel = _make_kernel(T, Bp, D, H, DU, offs)
    vmem = pl.BlockSpec(memory_space=pltpu.MemorySpace.VMEM)

    # TODO(synk): once B >= 16, tile the batch with grid=(Bp//Btile,) and
    #   dimension_semantics=("parallel",) so v7x's two TensorCores split it.
    @jax.jit
    def forward(x, packed):
        # x: (B, T, D) batch-first float32, like the PyTorch module.
        # The transpose/pad/reshape below are tiny copies fused by XLA inside
        # this single jit; pass time-major pre-padded input instead if per-call
        # dispatch latency ever matters.
        x_tm = jnp.transpose(x, (1, 0, 2))                       # (T, B, D)
        x_tm = jnp.pad(x_tm, ((0, 0), (0, Bp - B), (0, 0)))      # (T, Bp, D)
        x_flat = x_tm.reshape(T * Bp, D)
        out = pl.pallas_call(
            kernel,
            out_shape=jax.ShapeDtypeStruct((Bp, HEAD_W), jnp.float32),
            in_specs=[vmem, vmem],
            out_specs=vmem,
            scratch_shapes=[pltpu.VMEM((T * Bp, 4 * H), jnp.float32),
                            pltpu.VMEM((Bp, 2 * H), jnp.float32)],
        )(x_flat, packed)
        return out[:B, :1]

    return forward


# ------------------------- parameter init (deterministic) -------------------------

def init_params(key, input_dim, lstm_units, dense_units):
    H, DU = lstm_units, dense_units
    ks = jax.random.split(key, 16)
    u = lambda k, shape, scale: jax.random.uniform(
        k, shape, jnp.float32, -scale, scale)
    s = 1.0 / jnp.sqrt(H)

    # PyTorch layouts: W_ih (4H, in), W_hh (4H, H), Linear W (out, in).
    # Stored pre-transposed for the kernel's `x @ W` convention; b_ih+b_hh folded.
    p = {}
    p["wih1"] = u(ks[0], (4 * H, input_dim), s).T            # (D, 4H)
    p["whh1"] = u(ks[1], (4 * H, H), s).T                    # (H, 4H)
    p["b1"] = (u(ks[2], (4 * H,), s) + u(ks[3], (4 * H,), s)).reshape(1, 4 * H)
    p["wih2"] = u(ks[4], (4 * H, H), s).T                    # (H, 4H)
    p["whh2"] = u(ks[5], (4 * H, H), s).T                    # (H, 4H)
    p["b2"] = (u(ks[6], (4 * H,), s) + u(ks[7], (4 * H,), s)).reshape(1, 4 * H)

    s1 = 1.0 / jnp.sqrt(H)
    p["wfc1"] = u(ks[8], (DU, H), s1).T                      # (H, DU)
    p["bfc1"] = u(ks[9], (DU,), s1).reshape(1, DU)
    s2 = 1.0 / jnp.sqrt(DU)
    p["wfc2"] = u(ks[10], (DU // 2, DU), s2).T               # (DU, DU//2)
    p["bfc2"] = u(ks[11], (DU // 2,), s2).reshape(1, DU // 2)
    s3 = 1.0 / jnp.sqrt(DU // 2)
    p["wfc3"] = u(ks[12], (1, DU // 2), s3).T                # (DU//2, 1)
    p["bfc3"] = u(ks[13], (1,), s3).reshape(1, 1)
    return p


# ------------------------- pure-JAX reference (verification) -------------------------

def reference_forward(x, p):
    B, T, _ = x.shape
    H = p["whh1"].shape[0]

    def cell(inp, h, c, wih, whh, b):
        g = inp @ wih + h @ whh + b
        i = jax.nn.sigmoid(g[:, :H])
        f = jax.nn.sigmoid(g[:, H:2 * H])
        gg = jnp.tanh(g[:, 2 * H:3 * H])
        o = jax.nn.sigmoid(g[:, 3 * H:])
        c = f * c + i * gg
        return o * jnp.tanh(c), c

    def scan_fn(carry, xt):
        h1, c1, h2, c2 = carry
        h1, c1 = cell(xt, h1, c1, p["wih1"], p["whh1"], p["b1"])
        h2, c2 = cell(h1, h2, c2, p["wih2"], p["whh2"], p["b2"])
        return (h1, c1, h2, c2), None

    z0 = jnp.zeros((B, H), jnp.float32)
    (_, _, h2, _), _ = lax.scan(scan_fn, (z0, z0, z0, z0),
                                jnp.transpose(x, (1, 0, 2)))
    z = jnp.maximum(h2 @ p["wfc1"] + p["bfc1"], 0.0)
    z = jnp.maximum(z @ p["wfc2"] + p["bfc2"], 0.0)
    return z @ p["wfc3"] + p["bfc3"]


# ------------------------- main -------------------------

if __name__ == "__main__":
    B, T = 4, 8                 # batch, sequence length
    input_dim = 8
    lstm_units = 32
    dense_units = 32
    # dropout = 0.1 -> identity at inference time

    key = jax.random.PRNGKey(0)
    kx, kp = jax.random.split(key)
    x = jax.random.normal(kx, (B, T, input_dim), dtype=jnp.float32)
    params = init_params(kp, input_dim, lstm_units, dense_units)

    packed, offs = pack_params(params, input_dim, lstm_units, dense_units)
    forward = make_forward(T, B, input_dim, lstm_units, dense_units, offs)

    out = jax.block_until_ready(forward(x, packed))
    ref = reference_forward(x, params)
    assert out.shape == (B, 1)
    assert jnp.allclose(out, ref, atol=1e-5, rtol=1e-5), (out, ref)

    print("KERNEL_OK")
</pallas_src>

<mosaic_0001>
module attributes {stable_mosaic.version = 11 : i64} {
  func.func @kernel(%arg0: memref<64x8xf32, #tpu.memory_space<vmem>>, %arg1: memref<400x256xf32, #tpu.memory_space<vmem>>, %arg2: memref<8x128xf32, #tpu.memory_space<vmem>>, %arg3: memref<64x128xf32, #tpu.memory_space<vmem>>, %arg4: memref<8x64xf32, #tpu.memory_space<vmem>>) attributes {dimension_semantics = [], scalar_prefetch = 0 : i64, scratch_operands = 2 : i64, tpu.core_type = #tpu.core_type<tc>} {
    %c0 = arith.constant 0 : index
    %c0_0 = arith.constant 0 : index
    %0 = vector.load %arg1[%c0, %c0_0] : memref<400x256xf32, #tpu.memory_space<vmem>>, vector<8x128xf32>
    %c360 = arith.constant 360 : index
    %c0_1 = arith.constant 0 : index
    %1 = vector.load %arg1[%c360, %c0_1] : memref<400x256xf32, #tpu.memory_space<vmem>>, vector<1x128xf32>
    %c0_2 = arith.constant 0 : index
    %c0_3 = arith.constant 0 : index
    %2 = vector.load %arg0[%c0_2, %c0_3] : memref<64x8xf32, #tpu.memory_space<vmem>>, vector<64x8xf32>
    %cst = arith.constant dense<0.000000e+00> : vector<64x128xf32>
    %3 = tpu.matmul %2, %0, %cst {dimension_numbers = #tpu.dot_dimension_numbers<[1], [0], [0], [1], [0, 0, 1, 1], [], []>} : vector<64x8xf32>, vector<8x128xf32>, vector<64x128xf32> -> vector<64x128xf32>
    %4 = vector.broadcast %1 : vector<1x128xf32> to vector<64x128xf32>
    %5 = arith.addf %3, %4 : vector<64x128xf32>
    %c0_4 = arith.constant 0 : index
    %c0_5 = arith.constant 0 : index
    %6 = vector.load %arg3[%c0_4, %c0_5] : memref<64x128xf32, #tpu.memory_space<vmem>>, vector<64x128xf32>
    tpu.vector_store %arg3[%c0_4, %c0_5], %5 {strides = array<i32>} : memref<64x128xf32, #tpu.memory_space<vmem>>, vector<64x128xf32>,
    %c8 = arith.constant 8 : index
    %c0_6 = arith.constant 0 : index
    %7 = vector.load %arg1[%c8, %c0_6] : memref<400x256xf32, #tpu.memory_space<vmem>>, vector<64x256xf32>
    %c368 = arith.constant 368 : index
    %c0_7 = arith.constant 0 : index
    %8 = vector.load %arg1[%c368, %c0_7] : memref<400x256xf32, #tpu.memory_space<vmem>>, vector<1x128xf32>
    %9 = vector.shape_cast %8 : vector<1x128xf32> to vector<1x128xf32>
    %10 = vector.broadcast %9 : vector<1x128xf32> to vector<8x128xf32>
    %cst_8 = arith.constant 0.000000e+00 : f32
    %11 = vector.broadcast %cst_8 : f32 to vector<8x32xf32>
    %cst_9 = arith.constant 0.000000e+00 : f32
    %12 = vector.broadcast %cst_9 : f32 to vector<8x128xf32>
    %cst_10 = arith.constant 0.000000e+00 : f32
    %13 = vector.broadcast %cst_10 : f32 to vector<8x64xf32>
    %c0_11 = arith.constant 0 : index
    %c0_12 = arith.constant 0 : index
    %14 = vector.load %arg4[%c0_11, %c0_12] : memref<8x64xf32, #tpu.memory_space<vmem>>, vector<8x64xf32>
    tpu.vector_store %arg4[%c0_11, %c0_12], %13 {strides = array<i32>} : memref<8x64xf32, #tpu.memory_space<vmem>>, vector<8x64xf32>,
    %c0_13 = arith.constant 0 : index
    %c0_14 = arith.constant 0 : index
    %15 = vector.load %arg3[%c0_13, %c0_14] : memref<64x128xf32, #tpu.memory_space<vmem>>, vector<8x128xf32>
    %16 = arith.addf %15, %12 : vector<8x128xf32>
    %17 = arith.negf %16 : vector<8x128xf32>
    %18 = math.exp %17 : vector<8x128xf32>
    %cst_15 = arith.constant 1.000000e+00 : f32
    %19 = vector.broadcast %cst_15 : f32 to vector<8x128xf32>
    %20 = arith.addf %19, %18 : vector<8x128xf32>
    %21 = arith.divf %19, %20 : vector<8x128xf32>
    %22 = math.tanh %16 : vector<8x128xf32>
    %23 = vector.extract_strided_slice %21 {offsets = [0, 0], sizes = [8, 32], strides = [1, 1]} : vector<8x128xf32> to vector<8x32xf32>
    %24 = vector.extract_strided_slice %21 {offsets = [0, 32], sizes = [8, 32], strides = [1, 1]} : vector<8x128xf32> to vector<8x32xf32>
    %25 = vector.extract_strided_slice %21 {offsets = [0, 96], sizes = [8, 32], strides = [1, 1]} : vector<8x128xf32> to vector<8x32xf32>
    %26 = vector.extract_strided_slice %22 {offsets = [0, 64], sizes = [8, 32], strides = [1, 1]} : vector<8x128xf32> to vector<8x32xf32>
    %27 = arith.mulf %24, %11 : vector<8x32xf32>
    %28 = arith.mulf %23, %26 : vector<8x32xf32>
    %29 = arith.addf %27, %28 : vector<8x32xf32>
    %30 = math.tanh %29 : vector<8x32xf32>
    %31 = arith.mulf %25, %30 : vector<8x32xf32>
    %c0_16 = arith.constant 0 : index
    %c0_17 = arith.constant 0 : index
    %32 = vector.load %arg4[%c0_16, %c0_17] : memref<8x64xf32, #tpu.memory_space<vmem>>, vector<8x32xf32>
    tpu.vector_store %arg4[%c0_16, %c0_17], %31 {strides = array<i32>} : memref<8x64xf32, #tpu.memory_space<vmem>>, vector<8x32xf32>,
    %c0_18 = arith.constant 0 : index
    %c0_19 = arith.constant 0 : index
    %33 = vector.load %arg4[%c0_18, %c0_19] : memref<8x64xf32, #tpu.memory_space<vmem>>, vector<8x64xf32>
    %cst_20 = arith.constant dense<0.000000e+00> : vector<8x256xf32>
    %34 = tpu.matmul %33, %7, %cst_20 {dimension_numbers = #tpu.dot_dimension_numbers<[1], [0], [0], [1], [0, 0, 1, 1], [], []>} : vector<8x64xf32>, vector<64x256xf32>, vector<8x256xf32> -> vector<8x256xf32>
    %35 = vector.extract_strided_slice %34 {offsets = [0, 0], sizes = [8, 128], strides = [1, 1]} : vector<8x256xf32> to vector<8x128xf32>
    %36 = vector.extract_strided_slice %34 {offsets = [0, 128], sizes = [8, 128], strides = [1, 1]} : vector<8x256xf32> to vector<8x128xf32>
    %37 = arith.addf %36, %10 : vector<8x128xf32>
    %38 = arith.negf %37 : vector<8x128xf32>
    %39 = math.exp %38 : vector<8x128xf32>
    %cst_21 = arith.constant 1.000000e+00 : f32
    %40 = vector.broadcast %cst_21 : f32 to vector<8x128xf32>
    %41 = arith.addf %40, %39 : vector<8x128xf32>
    %42 = arith.divf %40, %41 : vector<8x128xf32>
    %43 = math.tanh %37 : vector<8x128xf32>
    %44 = vector.extract_strided_slice %42 {offsets = [0, 0], sizes = [8, 32], strides = [1, 1]} : vector<8x128xf32> to vector<8x32xf32>
    %45 = vector.extract_strided_slice %42 {offsets = [0, 32], sizes = [8, 32], strides = [1, 1]} : vector<8x128xf32> to vector<8x32xf32>
    %46 = vector.extract_strided_slice %42 {offsets = [0, 96], sizes = [8, 32], strides = [1, 1]} : vector<8x128xf32> to vector<8x32xf32>
    %47 = vector.extract_strided_slice %43 {offsets = [0, 64], sizes = [8, 32], strides = [1, 1]} : vector<8x128xf32> to vector<8x32xf32>
    %48 = arith.mulf %45, %11 : vector<8x32xf32>
    %49 = arith.mulf %44, %47 : vector<8x32xf32>
    %50 = arith.addf %48, %49 : vector<8x32xf32>
    %51 = math.tanh %50 : vector<8x32xf32>
    %52 = arith.mulf %46, %51 : vector<8x32xf32>
    %c0_22 = arith.constant 0 : index
    %c32 = arith.constant 32 : index
    %53 = vector.load %arg4[%c0_22, %c32] : memref<8x64xf32, #tpu.memory_space<vmem>>, vector<8x32xf32>
    tpu.vector_store %arg4[%c0_22, %c32], %52 {strides = array<i32>} : memref<8x64xf32, #tpu.memory_space<vmem>>, vector<8x32xf32>,
    %c8_23 = arith.constant 8 : index
    %c0_24 = arith.constant 0 : index
    %54 = vector.load %arg3[%c8_23, %c0_24] : memref<64x128xf32, #tpu.memory_space<vmem>>, vector<8x128xf32>
    %55 = arith.addf %54, %35 : vector<8x128xf32>
    %56 = arith.negf %55 : vector<8x128xf32>
    %57 = math.exp %56 : vector<8x128xf32>
    %cst_25 = arith.constant 1.000000e+00 : f32
    %58 = vector.broadcast %cst_25 : f32 to vector<8x128xf32>
    %59 = arith.addf %58, %57 : vector<8x128xf32>
    %60 = arith.divf %58, %59 : vector<8x128xf32>
    %61 = math.tanh %55 : vector<8x128xf32>
    %62 = vector.extract_strided_slice %60 {offsets = [0, 0], sizes = [8, 32], strides = [1, 1]} : vector<8x128xf32> to vector<8x32xf32>
    %63 = vector.extract_strided_slice %60 {offsets = [0, 32], sizes = [8, 32], strides = [1, 1]} : vector<8x128xf32> to vector<8x32xf32>
    %64 = vector.extract_strided_slice %60 {offsets = [0, 96], sizes = [8, 32], strides = [1, 1]} : vector<8x128xf32> to vector<8x32xf32>
    %65 = vector.extract_strided_slice %61 {offsets = [0, 64], sizes = [8, 32], strides = [1, 1]} : vector<8x128xf32> to vector<8x32xf32>
    %66 = arith.mulf %63, %29 : vector<8x32xf32>
    %67 = arith.mulf %62, %65 : vector<8x32xf32>
    %68 = arith.addf %66, %67 : vector<8x32xf32>
    %69 = math.tanh %68 : vector<8x32xf32>
    %70 = arith.mulf %64, %69 : vector<8x32xf32>
    %c0_26 = arith.constant 0 : index
    %c0_27 = arith.constant 0 : index
    %71 = vector.load %arg4[%c0_26, %c0_27] : memref<8x64xf32, #tpu.memory_space<vmem>>, vector<8x32xf32>
    tpu.vector_store %arg4[%c0_26, %c0_27], %70 {strides = array<i32>} : memref<8x64xf32, #tpu.memory_space<vmem>>, vector<8x32xf32>,
    %c0_28 = arith.constant 0 : index
    %c0_29 = arith.constant 0 : index
    %72 = vector.load %arg4[%c0_28, %c0_29] : memref<8x64xf32, #tpu.memory_space<vmem>>, vector<8x64xf32>
    %cst_30 = arith.constant dense<0.000000e+00> : vector<8x256xf32>
    %73 = tpu.matmul %72, %7, %cst_30 {dimension_numbers = #tpu.dot_dimension_numbers<[1], [0], [0], [1], [0, 0, 1, 1], [], []>} : vector<8x64xf32>, vector<64x256xf32>, vector<8x256xf32> -> vector<8x256xf32>
    %74 = vector.extract_strided_slice %73 {offsets = [0, 0], sizes = [8, 128], strides = [1, 1]} : vector<8x256xf32> to vector<8x128xf32>
    %75 = vector.extract_strided_slice %73 {offsets = [0, 128], sizes = [8, 128], strides = [1, 1]} : vector<8x256xf32> to vector<8x128xf32>
    %76 = arith.addf %75, %10 : vector<8x128xf32>
    %77 = arith.negf %76 : vector<8x128xf32>
    %78 = math.exp %77 : vector<8x128xf32>
    %cst_31 = arith.constant 1.000000e+00 : f32
    %79 = vector.broadcast %cst_31 : f32 to vector<8x128xf32>
    %80 = arith.addf %79, %78 : vector<8x128xf32>
    %81 = arith.divf %79, %80 : vector<8x128xf32>
    %82 = math.tanh %76 : vector<8x128xf32>
    %83 = vector.extract_strided_slice %81 {offsets = [0, 0], sizes = [8, 32], strides = [1, 1]} : vector<8x128xf32> to vector<8x32xf32>
    %84 = vector.extract_strided_slice %81 {offsets = [0, 32], sizes = [8, 32], strides = [1, 1]} : vector<8x128xf32> to vector<8x32xf32>
    %85 = vector.extract_strided_slice %81 {offsets = [0, 96], sizes = [8, 32], strides = [1, 1]} : vector<8x128xf32> to vector<8x32xf32>
    %86 = vector.extract_strided_slice %82 {offsets = [0, 64], sizes = [8, 32], strides = [1, 1]} : vector<8x128xf32> to vector<8x32xf32>
    %87 = arith.mulf %84, %50 : vector<8x32xf32>
    %88 = arith.mulf %83, %86 : vector<8x32xf32>
    %89 = arith.addf %87, %88 : vector<8x32xf32>
    %90 = math.tanh %89 : vector<8x32xf32>
    %91 = arith.mulf %85, %90 : vector<8x32xf32>
    %c0_32 = arith.constant 0 : index
    %c32_33 = arith.constant 32 : index
    %92 = vector.load %arg4[%c0_32, %c32_33] : memref<8x64xf32, #tpu.memory_space<vmem>>, vector<8x32xf32>
    tpu.vector_store %arg4[%c0_32, %c32_33], %91 {strides = array<i32>} : memref<8x64xf32, #tpu.memory_space<vmem>>, vector<8x32xf32>,
    %c16 = arith.constant 16 : index
    %c0_34 = arith.constant 0 : index
    %93 = vector.load %arg3[%c16, %c0_34] : memref<64x128xf32, #tpu.memory_space<vmem>>, vector<8x128xf32>
    %94 = arith.addf %93, %74 : vector<8x128xf32>
    %95 = arith.negf %94 : vector<8x128xf32>
    %96 = math.exp %95 : vector<8x128xf32>
    %cst_35 = arith.constant 1.000000e+00 : f32
    %97 = vector.broadcast %cst_35 : f32 to vector<8x128xf32>
    %98 = arith.addf %97, %96 : vector<8x128xf32>
    %99 = arith.divf %97, %98 : vector<8x128xf32>
    %100 = math.tanh %94 : vector<8x128xf32>
    %101 = vector.extract_strided_slice %99 {offsets = [0, 0], sizes = [8, 32], strides = [1, 1]} : vector<8x128xf32> to vector<8x32xf32>
    %102 = vector.extract_strided_slice %99 {offsets = [0, 32], sizes = [8, 32], strides = [1, 1]} : vector<8x128xf32> to vector<8x32xf32>
    %103 = vector.extract_strided_slice %99 {offsets = [0, 96], sizes = [8, 32], strides = [1, 1]} : vector<8x128xf32> to vector<8x32xf32>
    %104 = vector.extract_strided_slice %100 {offsets = [0, 64], sizes = [8, 32], strides = [1, 1]} : vector<8x128xf32> to vector<8x32xf32>
    %105 = arith.mulf %102, %68 : vector<8x32xf32>
    %106 = arith.mulf %101, %104 : vector<8x32xf32>
    %107 = arith.addf %105, %106 : vector<8x32xf32>
    %108 = math.tanh %107 : vector<8x32xf32>
    %109 = arith.mulf %103, %108 : vector<8x32xf32>
    %c0_36 = arith.constant 0 : index
    %c0_37 = arith.constant 0 : index
    %110 = vector.load %arg4[%c0_36, %c0_37] : memref<8x64xf32, #tpu.memory_space<vmem>>, vector<8x32xf32>
    tpu.vector_store %arg4[%c0_36, %c0_37], %109 {strides = array<i32>} : memref<8x64xf32, #tpu.memory_space<vmem>>, vector<8x32xf32>,
    %c0_38 = arith.constant 0 : index
    %c0_39 = arith.constant 0 : index
    %111 = vector.load %arg4[%c0_38, %c0_39] : memref<8x64xf32, #tpu.memory_space<vmem>>, vector<8x64xf32>
    %cst_40 = arith.constant dense<0.000000e+00> : vector<8x256xf32>
    %112 = tpu.matmul %111, %7, %cst_40 {dimension_numbers = #tpu.dot_dimension_numbers<[1], [0], [0], [1], [0, 0, 1, 1], [], []>} : vector<8x64xf32>, vector<64x256xf32>, vector<8x256xf32> -> vector<8x256xf32>
    %113 = vector.extract_strided_slice %112 {offsets = [0, 0], sizes = [8, 128], strides = [1, 1]} : vector<8x256xf32> to vector<8x128xf32>
    %114 = vector.extract_strided_slice %112 {offsets = [0, 128], sizes = [8, 128], strides = [1, 1]} : vector<8x256xf32> to vector<8x128xf32>
    %115 = arith.addf %114, %10 : vector<8x128xf32>
    %116 = arith.negf %115 : vector<8x128xf32>
    %117 = math.exp %116 : vector<8x128xf32>
    %cst_41 = arith.constant 1.000000e+00 : f32
    %118 = vector.broadcast %cst_41 : f32 to vector<8x128xf32>
    %119 = arith.addf %118, %117 : vector<8x128xf32>
    %120 = arith.divf %118, %119 : vector<8x128xf32>
    %121 = math.tanh %115 : vector<8x128xf32>
    %122 = vector.extract_strided_slice %120 {offsets = [0, 0], sizes = [8, 32], strides = [1, 1]} : vector<8x128xf32> to vector<8x32xf32>
    %123 = vector.extract_strided_slice %120 {offsets = [0, 32], sizes = [8, 32], strides = [1, 1]} : vector<8x128xf32> to vector<8x32xf32>
    %124 = vector.extract_strided_slice %120 {offsets = [0, 96], sizes = [8, 32], strides = [1, 1]} : vector<8x128xf32> to vector<8x32xf32>
    %125 = vector.extract_strided_slice %121 {offsets = [0, 64], sizes = [8, 32], strides = [1, 1]} : vector<8x128xf32> to vector<8x32xf32>
    %126 = arith.mulf %123, %89 : vector<8x32xf32>
    %127 = arith.mulf %122, %125 : vector<8x32xf32>
    %128 = arith.addf %126, %127 : vector<8x32xf32>
    %129 = math.tanh %128 : vector<8x32xf32>
    %130 = arith.mulf %124, %129 : vector<8x32xf32>
    %c0_42 = arith.constant 0 : index
    %c32_43 = arith.constant 32 : index
    %131 = vector.load %arg4[%c0_42, %c32_43] : memref<8x64xf32, #tpu.memory_space<vmem>>, vector<8x32xf32>
    tpu.vector_store %arg4[%c0_42, %c32_43], %130 {strides = array<i32>} : memref<8x64xf32, #tpu.memory_space<vmem>>, vector<8x32xf32>,
    %c24 = arith.constant 24 : index
    %c0_44 = arith.constant 0 : index
    %132 = vector.load %arg3[%c24, %c0_44] : memref<64x128xf32, #tpu.memory_space<vmem>>, vector<8x128xf32>
    %133 = arith.addf %132, %113 : vector<8x128xf32>
    %134 = arith.negf %133 : vector<8x128xf32>
    %135 = math.exp %134 : vector<8x128xf32>
    %cst_45 = arith.constant 1.000000e+00 : f32
    %136 = vector.broadcast %cst_45 : f32 to vector<8x128xf32>
    %137 = arith.addf %136, %135 : vector<8x128xf32>
    %138 = arith.divf %136, %137 : vector<8x128xf32>
    %139 = math.tanh %133 : vector<8x128xf32>
    %140 = vector.extract_strided_slice %138 {offsets = [0, 0], sizes = [8, 32], strides = [1, 1]} : vector<8x128xf32> to vector<8x32xf32>
    %141 = vector.extract_strided_slice %138 {offsets = [0, 32], sizes = [8, 32], strides = [1, 1]} : vector<8x128xf32> to vector<8x32xf32>
    %142 = vector.extract_strided_slice %138 {offsets = [0, 96], sizes = [8, 32], strides = [1, 1]} : vector<8x128xf32> to vector<8x32xf32>
    %143 = vector.extract_strided_slice %139 {offsets = [0, 64], sizes = [8, 32], strides = [1, 1]} : vector<8x128xf32> to vector<8x32xf32>
    %144 = arith.mulf %141, %107 : vector<8x32xf32>
    %145 = arith.mulf %140, %143 : vector<8x32xf32>
    %146 = arith.addf %144, %145 : vector<8x32xf32>
    %147 = math.tanh %146 : vector<8x32xf32>
    %148 = arith.mulf %142, %147 : vector<8x32xf32>
    %c0_46 = arith.constant 0 : index
    %c0_47 = arith.constant 0 : index
    %149 = vector.load %arg4[%c0_46, %c0_47] : memref<8x64xf32, #tpu.memory_space<vmem>>, vector<8x32xf32>
    tpu.vector_store %arg4[%c0_46, %c0_47], %148 {strides = array<i32>} : memref<8x64xf32, #tpu.memory_space<vmem>>, vector<8x32xf32>,
    %c0_48 = arith.constant 0 : index
    %c0_49 = arith.constant 0 : index
    %150 = vector.load %arg4[%c0_48, %c0_49] : memref<8x64xf32, #tpu.memory_space<vmem>>, vector<8x64xf32>
    %cst_50 = arith.constant dense<0.000000e+00> : vector<8x256xf32>
    %151 = tpu.matmul %150, %7, %cst_50 {dimension_numbers = #tpu.dot_dimension_numbers<[1], [0], [0], [1], [0, 0, 1, 1], [], []>} : vector<8x64xf32>, vector<64x256xf32>, vector<8x256xf32> -> vector<8x256xf32>
    %152 = vector.extract_strided_slice %151 {offsets = [0, 0], sizes = [8, 128], strides = [1, 1]} : vector<8x256xf32> to vector<8x128xf32>
    %153 = vector.extract_strided_slice %151 {offsets = [0, 128], sizes = [8, 128], strides = [1, 1]} : vector<8x256xf32> to vector<8x128xf32>
    %154 = arith.addf %153, %10 : vector<8x128xf32>
    %155 = arith.negf %154 : vector<8x128xf32>
    %156 = math.exp %155 : vector<8x128xf32>
    %cst_51 = arith.constant 1.000000e+00 : f32
    %157 = vector.broadcast %cst_51 : f32 to vector<8x128xf32>
    %158 = arith.addf %157, %156 : vector<8x128xf32>
    %159 = arith.divf %157, %158 : vector<8x128xf32>
    %160 = math.tanh %154 : vector<8x128xf32>
    %161 = vector.extract_strided_slice %159 {offsets = [0, 0], sizes = [8, 32], strides = [1, 1]} : vector<8x128xf32> to vector<8x32xf32>
    %162 = vector.extract_strided_slice %159 {offsets = [0, 32], sizes = [8, 32], strides = [1, 1]} : vector<8x128xf32> to vector<8x32xf32>
    %163 = vector.extract_strided_slice %159 {offsets = [0, 96], sizes = [8, 32], strides = [1, 1]} : vector<8x128xf32> to vector<8x32xf32>
    %164 = vector.extract_strided_slice %160 {offsets = [0, 64], sizes = [8, 32], strides = [1, 1]} : vector<8x128xf32> to vector<8x32xf32>
    %165 = arith.mulf %162, %128 : vector<8x32xf32>
    %166 = arith.mulf %161, %164 : vector<8x32xf32>
    %167 = arith.addf %165, %166 : vector<8x32xf32>
    %168 = math.tanh %167 : vector<8x32xf32>
    %169 = arith.mulf %163, %168 : vector<8x32xf32>
    %c0_52 = arith.constant 0 : index
    %c32_53 = arith.constant 32 : index
    %170 = vector.load %arg4[%c0_52, %c32_53] : memref<8x64xf32, #tpu.memory_space<vmem>>, vector<8x32xf32>
    tpu.vector_store %arg4[%c0_52, %c32_53], %169 {strides = array<i32>} : memref<8x64xf32, #tpu.memory_space<vmem>>, vector<8x32xf32>,
    %c32_54 = arith.constant 32 : index
    %c0_55 = arith.constant 0 : index
    %171 = vector.load %arg3[%c32_54, %c0_55] : memref<64x128xf32, #tpu.memory_space<vmem>>, vector<8x128xf32>
    %172 = arith.addf %171, %152 : vector<8x128xf32>
    %173 = arith.negf %172 : vector<8x128xf32>
    %174 = math.exp %173 : vector<8x128xf32>
    %cst_56 = arith.constant 1.000000e+00 : f32
    %175 = vector.broadcast %cst_56 : f32 to vector<8x128xf32>
    %176 = arith.addf %175, %174 : vector<8x128xf32>
    %177 = arith.divf %175, %176 : vector<8x128xf32>
    %178 = math.tanh %172 : vector<8x128xf32>
    %179 = vector.extract_strided_slice %177 {offsets = [0, 0], sizes = [8, 32], strides = [1, 1]} : vector<8x128xf32> to vector<8x32xf32>
    %180 = vector.extract_strided_slice %177 {offsets = [0, 32], sizes = [8, 32], strides = [1, 1]} : vector<8x128xf32> to vector<8x32xf32>
    %181 = vector.extract_strided_slice %177 {offsets = [0, 96], sizes = [8, 32], strides = [1, 1]} : vector<8x128xf32> to vector<8x32xf32>
    %182 = vector.extract_strided_slice %178 {offsets = [0, 64], sizes = [8, 32], strides = [1, 1]} : vector<8x128xf32> to vector<8x32xf32>
    %183 = arith.mulf %180, %146 : vector<8x32xf32>
    %184 = arith.mulf %179, %182 : vector<8x32xf32>
    %185 = arith.addf %183, %184 : vector<8x32xf32>
    %186 = math.tanh %185 : vector<8x32xf32>
    %187 = arith.mulf %181, %186 : vector<8x32xf32>
    %c0_57 = arith.constant 0 : index
    %c0_58 = arith.constant 0 : index
    %188 = vector.load %arg4[%c0_57, %c0_58] : memref<8x64xf32, #tpu.memory_space<vmem>>, vector<8x32xf32>
    tpu.vector_store %arg4[%c0_57, %c0_58], %187 {strides = array<i32>} : memref<8x64xf32, #tpu.memory_space<vmem>>, vector<8x32xf32>,
    %c0_59 = arith.constant 0 : index
    %c0_60 = arith.constant 0 : index
    %189 = vector.load %arg4[%c0_59, %c0_60] : memref<8x64xf32, #tpu.memory_space<vmem>>, vector<8x64xf32>
    %cst_61 = arith.constant dense<0.000000e+00> : vector<8x256xf32>
    %190 = tpu.matmul %189, %7, %cst_61 {dimension_numbers = #tpu.dot_dimension_numbers<[1], [0], [0], [1], [0, 0, 1, 1], [], []>} : vector<8x64xf32>, vector<64x256xf32>, vector<8x256xf32> -> vector<8x256xf32>
    %191 = vector.extract_strided_slice %190 {offsets = [0, 0], sizes = [8, 128], strides = [1, 1]} : vector<8x256xf32> to vector<8x128xf32>
    %192 = vector.extract_strided_slice %190 {offsets = [0, 128], sizes = [8, 128], strides = [1, 1]} : vector<8x256xf32> to vector<8x128xf32>
    %193 = arith.addf %192, %10 : vector<8x128xf32>
    %194 = arith.negf %193 : vector<8x128xf32>
    %195 = math.exp %194 : vector<8x128xf32>
    %cst_62 = arith.constant 1.000000e+00 : f32
    %196 = vector.broadcast %cst_62 : f32 to vector<8x128xf32>
    %197 = arith.addf %196, %195 : vector<8x128xf32>
    %198 = arith.divf %196, %197 : vector<8x128xf32>
    %199 = math.tanh %193 : vector<8x128xf32>
    %200 = vector.extract_strided_slice %198 {offsets = [0, 0], sizes = [8, 32], strides = [1, 1]} : vector<8x128xf32> to vector<8x32xf32>
    %201 = vector.extract_strided_slice %198 {offsets = [0, 32], sizes = [8, 32], strides = [1, 1]} : vector<8x128xf32> to vector<8x32xf32>
    %202 = vector.extract_strided_slice %198 {offsets = [0, 96], sizes = [8, 32], strides = [1, 1]} : vector<8x128xf32> to vector<8x32xf32>
    %203 = vector.extract_strided_slice %199 {offsets = [0, 64], sizes = [8, 32], strides = [1, 1]} : vector<8x128xf32> to vector<8x32xf32>
    %204 = arith.mulf %201, %167 : vector<8x32xf32>
    %205 = arith.mulf %200, %203 : vector<8x32xf32>
    %206 = arith.addf %204, %205 : vector<8x32xf32>
    %207 = math.tanh %206 : vector<8x32xf32>
    %208 = arith.mulf %202, %207 : vector<8x32xf32>
    %c0_63 = arith.constant 0 : index
    %c32_64 = arith.constant 32 : index
    %209 = vector.load %arg4[%c0_63, %c32_64] : memref<8x64xf32, #tpu.memory_space<vmem>>, vector<8x32xf32>
    tpu.vector_store %arg4[%c0_63, %c32_64], %208 {strides = array<i32>} : memref<8x64xf32, #tpu.memory_space<vmem>>, vector<8x32xf32>,
    %c40 = arith.constant 40 : index
    %c0_65 = arith.constant 0 : index
    %210 = vector.load %arg3[%c40, %c0_65] : memref<64x128xf32, #tpu.memory_space<vmem>>, vector<8x128xf32>
    %211 = arith.addf %210, %191 : vector<8x128xf32>
    %212 = arith.negf %211 : vector<8x128xf32>
    %213 = math.exp %212 : vector<8x128xf32>
    %cst_66 = arith.constant 1.000000e+00 : f32
    %214 = vector.broadcast %cst_66 : f32 to vector<8x128xf32>
    %215 = arith.addf %214, %213 : vector<8x128xf32>
    %216 = arith.divf %214, %215 : vector<8x128xf32>
    %217 = math.tanh %211 : vector<8x128xf32>
    %218 = vector.extract_strided_slice %216 {offsets = [0, 0], sizes = [8, 32], strides = [1, 1]} : vector<8x128xf32> to vector<8x32xf32>
    %219 = vector.extract_strided_slice %216 {offsets = [0, 32], sizes = [8, 32], strides = [1, 1]} : vector<8x128xf32> to vector<8x32xf32>
    %220 = vector.extract_strided_slice %216 {offsets = [0, 96], sizes = [8, 32], strides = [1, 1]} : vector<8x128xf32> to vector<8x32xf32>
    %221 = vector.extract_strided_slice %217 {offsets = [0, 64], sizes = [8, 32], strides = [1, 1]} : vector<8x128xf32> to vector<8x32xf32>
    %222 = arith.mulf %219, %185 : vector<8x32xf32>
    %223 = arith.mulf %218, %221 : vector<8x32xf32>
    %224 = arith.addf %222, %223 : vector<8x32xf32>
    %225 = math.tanh %224 : vector<8x32xf32>
    %226 = arith.mulf %220, %225 : vector<8x32xf32>
    %c0_67 = arith.constant 0 : index
    %c0_68 = arith.constant 0 : index
    %227 = vector.load %arg4[%c0_67, %c0_68] : memref<8x64xf32, #tpu.memory_space<vmem>>, vector<8x32xf32>
    tpu.vector_store %arg4[%c0_67, %c0_68], %226 {strides = array<i32>} : memref<8x64xf32, #tpu.memory_space<vmem>>, vector<8x32xf32>,
    %c0_69 = arith.constant 0 : index
    %c0_70 = arith.constant 0 : index
    %228 = vector.load %arg4[%c0_69, %c0_70] : memref<8x64xf32, #tpu.memory_space<vmem>>, vector<8x64xf32>
    %cst_71 = arith.constant dense<0.000000e+00> : vector<8x256xf32>
    %229 = tpu.matmul %228, %7, %cst_71 {dimension_numbers = #tpu.dot_dimension_numbers<[1], [0], [0], [1], [0, 0, 1, 1], [], []>} : vector<8x64xf32>, vector<64x256xf32>, vector<8x256xf32> -> vector<8x256xf32>
    %230 = vector.extract_strided_slice %229 {offsets = [0, 0], sizes = [8, 128], strides = [1, 1]} : vector<8x256xf32> to vector<8x128xf32>
    %231 = vector.extract_strided_slice %229 {offsets = [0, 128], sizes = [8, 128], strides = [1, 1]} : vector<8x256xf32> to vector<8x128xf32>
    %232 = arith.addf %231, %10 : vector<8x128xf32>
    %233 = arith.negf %232 : vector<8x128xf32>
    %234 = math.exp %233 : vector<8x128xf32>
    %cst_72 = arith.constant 1.000000e+00 : f32
    %235 = vector.broadcast %cst_72 : f32 to vector<8x128xf32>
    %236 = arith.addf %235, %234 : vector<8x128xf32>
    %237 = arith.divf %235, %236 : vector<8x128xf32>
    %238 = math.tanh %232 : vector<8x128xf32>
    %239 = vector.extract_strided_slice %237 {offsets = [0, 0], sizes = [8, 32], strides = [1, 1]} : vector<8x128xf32> to vector<8x32xf32>
    %240 = vector.extract_strided_slice %237 {offsets = [0, 32], sizes = [8, 32], strides = [1, 1]} : vector<8x128xf32> to vector<8x32xf32>
    %241 = vector.extract_strided_slice %237 {offsets = [0, 96], sizes = [8, 32], strides = [1, 1]} : vector<8x128xf32> to vector<8x32xf32>
    %242 = vector.extract_strided_slice %238 {offsets = [0, 64], sizes = [8, 32], strides = [1, 1]} : vector<8x128xf32> to vector<8x32xf32>
    %243 = arith.mulf %240, %206 : vector<8x32xf32>
    %244 = arith.mulf %239, %242 : vector<8x32xf32>
    %245 = arith.addf %243, %244 : vector<8x32xf32>
    %246 = math.tanh %245 : vector<8x32xf32>
    %247 = arith.mulf %241, %246 : vector<8x32xf32>
    %c0_73 = arith.constant 0 : index
    %c32_74 = arith.constant 32 : index
    %248 = vector.load %arg4[%c0_73, %c32_74] : memref<8x64xf32, #tpu.memory_space<vmem>>, vector<8x32xf32>
    tpu.vector_store %arg4[%c0_73, %c32_74], %247 {strides = array<i32>} : memref<8x64xf32, #tpu.memory_space<vmem>>, vector<8x32xf32>,
    %c48 = arith.constant 48 : index
    %c0_75 = arith.constant 0 : index
    %249 = vector.load %arg3[%c48, %c0_75] : memref<64x128xf32, #tpu.memory_space<vmem>>, vector<8x128xf32>
    %250 = arith.addf %249, %230 : vector<8x128xf32>
    %251 = arith.negf %250 : vector<8x128xf32>
    %252 = math.exp %251 : vector<8x128xf32>
    %cst_76 = arith.constant 1.000000e+00 : f32
    %253 = vector.broadcast %cst_76 : f32 to vector<8x128xf32>
    %254 = arith.addf %253, %252 : vector<8x128xf32>
    %255 = arith.divf %253, %254 : vector<8x128xf32>
    %256 = math.tanh %250 : vector<8x128xf32>
    %257 = vector.extract_strided_slice %255 {offsets = [0, 0], sizes = [8, 32], strides = [1, 1]} : vector<8x128xf32> to vector<8x32xf32>
    %258 = vector.extract_strided_slice %255 {offsets = [0, 32], sizes = [8, 32], strides = [1, 1]} : vector<8x128xf32> to vector<8x32xf32>
    %259 = vector.extract_strided_slice %255 {offsets = [0, 96], sizes = [8, 32], strides = [1, 1]} : vector<8x128xf32> to vector<8x32xf32>
    %260 = vector.extract_strided_slice %256 {offsets = [0, 64], sizes = [8, 32], strides = [1, 1]} : vector<8x128xf32> to vector<8x32xf32>
    %261 = arith.mulf %258, %224 : vector<8x32xf32>
    %262 = arith.mulf %257, %260 : vector<8x32xf32>
    %263 = arith.addf %261, %262 : vector<8x32xf32>
    %264 = math.tanh %263 : vector<8x32xf32>
    %265 = arith.mulf %259, %264 : vector<8x32xf32>
    %c0_77 = arith.constant 0 : index
    %c0_78 = arith.constant 0 : index
    %266 = vector.load %arg4[%c0_77, %c0_78] : memref<8x64xf32, #tpu.memory_space<vmem>>, vector<8x32xf32>
    tpu.vector_store %arg4[%c0_77, %c0_78], %265 {strides = array<i32>} : memref<8x64xf32, #tpu.memory_space<vmem>>, vector<8x32xf32>,
    %c0_79 = arith.constant 0 : index
    %c0_80 = arith.constant 0 : index
    %267 = vector.load %arg4[%c0_79, %c0_80] : memref<8x64xf32, #tpu.memory_space<vmem>>, vector<8x64xf32>
    %cst_81 = arith.constant dense<0.000000e+00> : vector<8x256xf32>
    %268 = tpu.matmul %267, %7, %cst_81 {dimension_numbers = #tpu.dot_dimension_numbers<[1], [0], [0], [1], [0, 0, 1, 1], [], []>} : vector<8x64xf32>, vector<64x256xf32>, vector<8x256xf32> -> vector<8x256xf32>
    %269 = vector.extract_strided_slice %268 {offsets = [0, 0], sizes = [8, 128], strides = [1, 1]} : vector<8x256xf32> to vector<8x128xf32>
    %270 = vector.extract_strided_slice %268 {offsets = [0, 128], sizes = [8, 128], strides = [1, 1]} : vector<8x256xf32> to vector<8x128xf32>
    %271 = arith.addf %270, %10 : vector<8x128xf32>
    %272 = arith.negf %271 : vector<8x128xf32>
    %273 = math.exp %272 : vector<8x128xf32>
    %cst_82 = arith.constant 1.000000e+00 : f32
    %274 = vector.broadcast %cst_82 : f32 to vector<8x128xf32>
    %275 = arith.addf %274, %273 : vector<8x128xf32>
    %276 = arith.divf %274, %275 : vector<8x128xf32>
    %277 = math.tanh %271 : vector<8x128xf32>
    %278 = vector.extract_strided_slice %276 {offsets = [0, 0], sizes = [8, 32], strides = [1, 1]} : vector<8x128xf32> to vector<8x32xf32>
    %279 = vector.extract_strided_slice %276 {offsets = [0, 32], sizes = [8, 32], strides = [1, 1]} : vector<8x128xf32> to vector<8x32xf32>
    %280 = vector.extract_strided_slice %276 {offsets = [0, 96], sizes = [8, 32], strides = [1, 1]} : vector<8x128xf32> to vector<8x32xf32>
    %281 = vector.extract_strided_slice %277 {offsets = [0, 64], sizes = [8, 32], strides = [1, 1]} : vector<8x128xf32> to vector<8x32xf32>
    %282 = arith.mulf %279, %245 : vector<8x32xf32>
    %283 = arith.mulf %278, %281 : vector<8x32xf32>
    %284 = arith.addf %282, %283 : vector<8x32xf32>
    %285 = math.tanh %284 : vector<8x32xf32>
    %286 = arith.mulf %280, %285 : vector<8x32xf32>
    %c0_83 = arith.constant 0 : index
    %c32_84 = arith.constant 32 : index
    %287 = vector.load %arg4[%c0_83, %c32_84] : memref<8x64xf32, #tpu.memory_space<vmem>>, vector<8x32xf32>
    tpu.vector_store %arg4[%c0_83, %c32_84], %286 {strides = array<i32>} : memref<8x64xf32, #tpu.memory_space<vmem>>, vector<8x32xf32>,
    %c56 = arith.constant 56 : index
    %c0_85 = arith.constant 0 : index
    %288 = vector.load %arg3[%c56, %c0_85] : memref<64x128xf32, #tpu.memory_space<vmem>>, vector<8x128xf32>
    %289 = arith.addf %288, %269 : vector<8x128xf32>
    %290 = arith.negf %289 : vector<8x128xf32>
    %291 = math.exp %290 : vector<8x128xf32>
    %cst_86 = arith.constant 1.000000e+00 : f32
    %292 = vector.broadcast %cst_86 : f32 to vector<8x128xf32>
    %293 = arith.addf %292, %291 : vector<8x128xf32>
    %294 = arith.divf %292, %293 : vector<8x128xf32>
    %295 = math.tanh %289 : vector<8x128xf32>
    %296 = vector.extract_strided_slice %294 {offsets = [0, 0], sizes = [8, 32], strides = [1, 1]} : vector<8x128xf32> to vector<8x32xf32>
    %297 = vector.extract_strided_slice %294 {offsets = [0, 32], sizes = [8, 32], strides = [1, 1]} : vector<8x128xf32> to vector<8x32xf32>
    %298 = vector.extract_strided_slice %294 {offsets = [0, 96], sizes = [8, 32], strides = [1, 1]} : vector<8x128xf32> to vector<8x32xf32>
    %299 = vector.extract_strided_slice %295 {offsets = [0, 64], sizes = [8, 32], strides = [1, 1]} : vector<8x128xf32> to vector<8x32xf32>
    %300 = arith.mulf %297, %263 : vector<8x32xf32>
    %301 = arith.mulf %296, %299 : vector<8x32xf32>
    %302 = arith.addf %300, %301 : vector<8x32xf32>
    %303 = math.tanh %302 : vector<8x32xf32>
    %304 = arith.mulf %298, %303 : vector<8x32xf32>
    %c0_87 = arith.constant 0 : index
    %c0_88 = arith.constant 0 : index
    %305 = vector.load %arg4[%c0_87, %c0_88] : memref<8x64xf32, #tpu.memory_space<vmem>>, vector<8x32xf32>
    tpu.vector_store %arg4[%c0_87, %c0_88], %304 {strides = array<i32>} : memref<8x64xf32, #tpu.memory_space<vmem>>, vector<8x32xf32>,
    %c0_89 = arith.constant 0 : index
    %c0_90 = arith.constant 0 : index
    %306 = vector.load %arg4[%c0_89, %c0_90] : memref<8x64xf32, #tpu.memory_space<vmem>>, vector<8x64xf32>
    %cst_91 = arith.constant dense<0.000000e+00> : vector<8x256xf32>
    %307 = tpu.matmul %306, %7, %cst_91 {dimension_numbers = #tpu.dot_dimension_numbers<[1], [0], [0], [1], [0, 0, 1, 1], [], []>} : vector<8x64xf32>, vector<64x256xf32>, vector<8x256xf32> -> vector<8x256xf32>
    %308 = vector.extract_strided_slice %307 {offsets = [0, 128], sizes = [8, 128], strides = [1, 1]} : vector<8x256xf32> to vector<8x128xf32>
    %309 = arith.addf %308, %10 : vector<8x128xf32>
    %310 = arith.negf %309 : vector<8x128xf32>
    %311 = math.exp %310 : vector<8x128xf32>
    %cst_92 = arith.constant 1.000000e+00 : f32
    %312 = vector.broadcast %cst_92 : f32 to vector<8x128xf32>
    %313 = arith.addf %312, %311 : vector<8x128xf32>
    %314 = arith.divf %312, %313 : vector<8x128xf32>
    %315 = math.tanh %309 : vector<8x128xf32>
    %316 = vector.extract_strided_slice %314 {offsets = [0, 0], sizes = [8, 32], strides = [1, 1]} : vector<8x128xf32> to vector<8x32xf32>
    %317 = vector.extract_strided_slice %314 {offsets = [0, 32], sizes = [8, 32], strides = [1, 1]} : vector<8x128xf32> to vector<8x32xf32>
    %318 = vector.extract_strided_slice %314 {offsets = [0, 96], sizes = [8, 32], strides = [1, 1]} : vector<8x128xf32> to vector<8x32xf32>
    %319 = vector.extract_strided_slice %315 {offsets = [0, 64], sizes = [8, 32], strides = [1, 1]} : vector<8x128xf32> to vector<8x32xf32>
    %320 = arith.mulf %317, %284 : vector<8x32xf32>
    %321 = arith.mulf %316, %319 : vector<8x32xf32>
    %322 = arith.addf %320, %321 : vector<8x32xf32>
    %323 = math.tanh %322 : vector<8x32xf32>
    %324 = arith.mulf %318, %323 : vector<8x32xf32>
    %c72 = arith.constant 72 : index
    %c0_93 = arith.constant 0 : index
    %325 = vector.load %arg1[%c72, %c0_93] : memref<400x256xf32, #tpu.memory_space<vmem>>, vector<32x128xf32>
    %c376 = arith.constant 376 : index
    %c0_94 = arith.constant 0 : index
    %326 = vector.load %arg1[%c376, %c0_94] : memref<400x256xf32, #tpu.memory_space<vmem>>, vector<1x128xf32>
    %c104 = arith.constant 104 : index
    %c0_95 = arith.constant 0 : index
    %327 = vector.load %arg1[%c104, %c0_95] : memref<400x256xf32, #tpu.memory_space<vmem>>, vector<128x128xf32>
    %c384 = arith.constant 384 : index
    %c0_96 = arith.constant 0 : index
    %328 = vector.load %arg1[%c384, %c0_96] : memref<400x256xf32, #tpu.memory_space<vmem>>, vector<1x128xf32>
    %c232 = arith.constant 232 : index
    %c0_97 = arith.constant 0 : index
    %329 = vector.load %arg1[%c232, %c0_97] : memref<400x256xf32, #tpu.memory_space<vmem>>, vector<128x128xf32>
    %c392 = arith.constant 392 : index
    %c0_98 = arith.constant 0 : index
    %330 = vector.load %arg1[%c392, %c0_98] : memref<400x256xf32, #tpu.memory_space<vmem>>, vector<1x128xf32>
    %cst_99 = arith.constant dense<0.000000e+00> : vector<8x128xf32>
    %331 = tpu.matmul %324, %325, %cst_99 {dimension_numbers = #tpu.dot_dimension_numbers<[1], [0], [0], [1], [0, 0, 1, 1], [], []>} : vector<8x32xf32>, vector<32x128xf32>, vector<8x128xf32> -> vector<8x128xf32>
    %332 = vector.broadcast %326 : vector<1x128xf32> to vector<8x128xf32>
    %333 = arith.addf %331, %332 : vector<8x128xf32>
    %cst_100 = arith.constant 0.000000e+00 : f32
    %334 = vector.broadcast %cst_100 : f32 to vector<8x128xf32>
    %335 = arith.maximumf %333, %334 : vector<8x128xf32>
    %cst_101 = arith.constant dense<0.000000e+00> : vector<8x128xf32>
    %336 = tpu.matmul %335, %327, %cst_101 {dimension_numbers = #tpu.dot_dimension_numbers<[1], [0], [0], [1], [0, 0, 1, 1], [], []>} : vector<8x128xf32>, vector<128x128xf32>, vector<8x128xf32> -> vector<8x128xf32>
    %337 = vector.broadcast %328 : vector<1x128xf32> to vector<8x128xf32>
    %338 = arith.addf %336, %337 : vector<8x128xf32>
    %cst_102 = arith.constant 0.000000e+00 : f32
    %339 = vector.broadcast %cst_102 : f32 to vector<8x128xf32>
    %340 = arith.maximumf %338, %339 : vector<8x128xf32>
    %cst_103 = arith.constant dense<0.000000e+00> : vector<8x128xf32>
    %341 = tpu.matmul %340, %329, %cst_103 {dimension_numbers = #tpu.dot_dimension_numbers<[1], [0], [0], [1], [0, 0, 1, 1], [], []>} : vector<8x128xf32>, vector<128x128xf32>, vector<8x128xf32> -> vector<8x128xf32>
    %342 = vector.broadcast %330 : vector<1x128xf32> to vector<8x128xf32>
    %343 = arith.addf %341, %342 : vector<8x128xf32>
    %c0_104 = arith.constant 0 : index
    %c0_105 = arith.constant 0 : index
    %344 = vector.load %arg2[%c0_104, %c0_105] : memref<8x128xf32, #tpu.memory_space<vmem>>, vector<8x128xf32>
    tpu.vector_store %arg2[%c0_104, %c0_105], %343 {strides = array<i32>} : memref<8x128xf32, #tpu.memory_space<vmem>>, vector<8x128xf32>,
    return
  }
}

</mosaic_0001>

<llo_original>
// kernel: forward.1
$region0: #{forward.1}
  #allocation0 [shape = 'u32[]', space=smem, size = 0x4, offset = 0x4, fixed_abs, tag = 'smem constant byte address 0x4 - core index']
  #allocation1 [shape = 'u32[72,128]{1,0:T(1,128)}', space=vmem, size = 0x9000, scoped, tag = 'internal scratch']
  #allocation2 [shape = 'f32[64,128]{1,0:T(8,128)}', space=vmem, size = 0x8000, scoped, tag = 'scratch operand']
  #allocation3 [shape = 'f32[8,64]{1,0:T(8,128)}', space=vmem, size = 0x1000, scoped, tag = 'scratch operand']
  %s0 = inlined_call_operand.vmem [shape: f32[64,8], index: 0, kind: input, shape index: {}]
  %s1 = inlined_call_operand.hbm [shape: f32[400,256], index: 1, kind: input, shape index: {}]
  %s2 = inlined_call_operand.vmem [shape: f32[8,128], index: 2, kind: output, shape index: {}]
  %s3 = sld [smem:[#allocation0]]
  $region22: #{forward.1} parent=0
    _
  %s5 = ssub.s32 1, %s3
  %s6 = scalar_select 0, %s5, %s3
  $region1: #{forward.1} parent=0
    #allocation4 [shape = 'u8[409600]{0}', space=vmem, size = 0x64000, scoped, tag = 'input window, operand 1, single buffered']
    #allocation5 [shape = 's32[1]{0}', space=sflag, size = 0x4, scoped, tag = 'scoped memory for forward.1']
    %7 = vsyncpa [#allocation5], 0
    // Predicated region
    $region2: #{forward.1} parent=1 // pred_check
      _
    $region3: #{forward.1} parent=1 // pred_check_branch
      %9 = sbr.rel (0) target = $region5
    $region4: #{forward.1} parent=1 // pred_region
      _
    $region5: #{forward.1} parent=1 // pred_fallthru
      _
    // Predicated region
    $region6: #{forward.1} parent=1 // pred_check
      _
    $region7: #{forward.1} parent=1 // pred_check_branch
      %11 = sbr.rel (0) target = $region9
    $region8: #{forward.1} parent=1 // pred_region
      %13 = vsyncadd [#allocation5], 0
      %s14 = sshll.u32 %s1, 4
      %s15 = int_to_ptr.hbm [resolvable:$true] %s14
      %s16 = sshll.u32 [#allocation4], 4
      %s17 = int_to_ptr.vmem [resolvable:$true] %s16
      %22 = dma.hbm_to_vmem [thread:$0]  %s15, 12800, %s17, [#allocation5], 256, 256, 16
    $region9: #{forward.1} parent=1 // pred_fallthru
      _
    // Predicated region
    $region10: #{forward.1} parent=1 // pred_check
      _
    $region11: #{forward.1} parent=1 // pred_check_branch
      %24 = sbr.rel (0) target = $region13
    $region12: #{forward.1} parent=1 // pred_region
      %26 = dma.done [#allocation5], 12800
    $region13: #{forward.1} parent=1 // pred_fallthru
      _
    %v27 = vld [vmem:[#allocation4] sm:$0xff]
    %v28 = vld [vmem:[#allocation4 + $0x2d0] ss:$0 sm:$0xff]
    %v29 = vld [vmem:[%s0] sm:$0xff]
    %v30 = vld [vmem:[%s0 + $0x8] sm:$0xff]
    %v31 = vld [vmem:[%s0 + $0x10] sm:$0xff]
    %v32 = vld [vmem:[%s0 + $0x18] sm:$0xff]
    %v33 = vld [vmem:[%s0 + $0x20] sm:$0xff]
    %v34 = vld [vmem:[%s0 + $0x28] sm:$0xff]
    %v35 = vld [vmem:[%s0 + $0x30] sm:$0xff]
    %v36 = vld [vmem:[%s0 + $0x38] sm:$0xff]
    %vm37 = vcmask 64512
    %v39 = vsel %vm37, %v29, 0
    %v42 = vsel %vm37, %v30, 0
    %v45 = vsel %vm37, %v31, 0
    %v48 = vsel %vm37, %v32, 0
    %v51 = vsel %vm37, %v33, 0
    %v54 = vsel %vm37, %v34, 0
    %v57 = vsel %vm37, %v35, 0
    %v60 = vsel %vm37, %v36, 0
    %62 = vmatpush.msra.mxu0 0.0
    %63 = vmatpush.msra.mxu0 0.0
    %64 = vmatpush.msra.mxu0 0.0
    %65 = vmatpush.msra.mxu0 0.0
    %66 = vmatpush.msra.mxu0 0.0
    %67 = vmatpush.msra.mxu0 0.0
    %68 = vmatpush.msra.mxu0 0.0
    %69 = vmatpush.msra.mxu0 0.0
    %70 = vmatpush.msra.mxu0 0.0
    %71 = vmatpush.msra.mxu0 0.0
    %72 = vmatpush.msra.mxu0 0.0
    %73 = vmatpush.msra.mxu0 0.0
    %74 = vmatpush.msra.mxu0 0.0
    %75 = vmatpush.msra.mxu0 0.0
    %76 = vmatpush.msra.mxu0 0.0
    %77 = vmatpush.msra.mxu0 %v27
    %78 = vmatmul.f32.gmra.mxu0 %v39
    %v79 = vpop.f32.mrf.mxu0
    %v80 = vadd.f32 %v28, %v79
    %81 = vmatmul.f32.gmra.mxu0 %v42
    %v82 = vpop.f32.mrf.mxu0
    %v83 = vadd.f32 %v28, %v82
    %84 = vmatmul.f32.gmra.mxu0 %v45
    %v85 = vpop.f32.mrf.mxu0
    %v86 = vadd.f32 %v28, %v85
    %87 = vmatmul.f32.gmra.mxu0 %v48
    %v88 = vpop.f32.mrf.mxu0
    %v89 = vadd.f32 %v28, %v88
    %90 = vmatmul.f32.gmra.mxu0 %v51
    %v91 = vpop.f32.mrf.mxu0
    %v92 = vadd.f32 %v28, %v91
    %93 = vmatmul.f32.gmra.mxu0 %v54
    %v94 = vpop.f32.mrf.mxu0
    %v95 = vadd.f32 %v28, %v94
    %96 = vmatmul.f32.gmra.mxu0 %v57
    %v97 = vpop.f32.mrf.mxu0
    %v98 = vadd.f32 %v28, %v97
    %99 = vmatmul.f32.gmra.mxu0 %v60
    %v100 = vpop.f32.mrf.mxu0
    %v101 = vadd.f32 %v28, %v100
    %102 = vdwg.mxu0
    %103 = vst [vmem:[#allocation2] sm:$0xff] %v80
    %104 = vst [vmem:[#allocation2 + $0x8] sm:$0xff] %v83
    %105 = vst [vmem:[#allocation2 + $0x10] sm:$0xff] %v86
    %106 = vst [vmem:[#allocation2 + $0x18] sm:$0xff] %v89
    %107 = vst [vmem:[#allocation2 + $0x20] sm:$0xff] %v92
    %108 = vst [vmem:[#allocation2 + $0x28] sm:$0xff] %v95
    %109 = vst [vmem:[#allocation2 + $0x30] sm:$0xff] %v98
    %110 = vst [vmem:[#allocation2 + $0x38] sm:$0xff] %v101
    %v111 = vld [vmem:[#allocation4 + $0x10] sm:$0xff]
    %v112 = vld [vmem:[#allocation4 + $0x18] sm:$0xff]
    %v113 = vld [vmem:[#allocation4 + $0x20] sm:$0xff]
    %v114 = vld [vmem:[#allocation4 + $0x28] sm:$0xff]
    %v115 = vld [vmem:[#allocation4 + $0x30] sm:$0xff]
    %v116 = vld [vmem:[#allocation4 + $0x38] sm:$0xff]
    %v117 = vld [vmem:[#allocation4 + $0x40] sm:$0xff]
    %v118 = vld [vmem:[#allocation4 + $0x48] sm:$0xff]
    %v119 = vld [vmem:[#allocation4 + $0x50] sm:$0xff]
    %v120 = vld [vmem:[#allocation4 + $0x58] sm:$0xff]
    %v121 = vld [vmem:[#allocation4 + $0x60] sm:$0xff]
    %v122 = vld [vmem:[#allocation4 + $0x68] sm:$0xff]
    %v123 = vld [vmem:[#allocation4 + $0x70] sm:$0xff]
    %v124 = vld [vmem:[#allocation4 + $0x78] sm:$0xff]
    %v125 = vld [vmem:[#allocation4 + $0x80] sm:$0xff]
    %v126 = vld [vmem:[#allocation4 + $0x88] sm:$0xff]
    %v127 = vld [vmem:[#allocation4 + $0x2e0] ss:$0 sm:$0xff]
    %vm128 = vcmask 523264
    %129 = vst.msk [vmem:[#allocation3] sm:$0xff] %vm128, 0.0
    %v130 = vld [vmem:[#allocation2] sm:$0xff]
    %v131 = vadd.f32 %v130, 0.0
    %v132 = vxor.u32 %v131, 2147483648
    %v133 = vmul.f32 %v132, 1.442695
    %v134 = vpow.pop %v133
    %v135 = vadd.f32 %v134, 1.0
    %v136 = vrcp.pop %v135
    %v137 = vmul.f32 %v135, %v136
    %v138 = vsub.f32 1.0, %v137
    %v139 = vmul.f32 %v136, %v138
    %v140 = vadd.f32 %v136, %v139
    %vm141 = vweird.f32 %v135
    %vm142 = vweird.f32 %v136
    %vm143 = vmor %vm141, %vm142
    %v144 = vsel %vm143, %v136, %v140
    %v145 = vand.u32 2147483647, %v135
    %vm146 = vcmp.eq.f32.partialorder %v145, 8.507059e+37
    %v147 = vand.u32 %v135, 2147483648
    %v148 = vor.u32 1.1754944e-38, %v147
    %v149 = vsel %vm146, %v148, %v144
    %v150 = vmul.f32 1.0, %v149
    %v151 = vtanh.pop %v131
    %v152 = vmul.f32 %v150, 0.0
    %154 = vrot.lane.b32.xlu0 %v151, 64
    %v155 = vpop.permute.xlu0 %154
    %v157 = vmul.f32 %v150, %v155
    %159 = vrot.lane.b32.xlu0 %v157, 32
    %v160 = vpop.permute.xlu0 %159
    %v162 = vadd.f32 %v152, %v160
    %v163 = vtanh.pop %v162
    %165 = vrot.lane.b32.xlu0 %v163, 64
    %v166 = vpop.permute.xlu0 %165
    %v168 = vmul.f32 %v150, %v166
    %170 = vrot.lane.b32.xlu0 %v168, 32
    %v171 = vpop.permute.xlu0 %170
    %vm173 = vcmask 261120
    %174 = vst.msk [vmem:[#allocation3] sm:$0xff] %vm173, %v171
    %v175 = vld [vmem:[#allocation3] sm:$0xff]
    %v177 = vsel %vm128, %v175, 0
    %179 = vmatpush.msra.mxu0 0.0
    %180 = vmatpush.msra.mxu0 0.0
    %181 = vmatpush.msra.mxu0 0.0
    %182 = vmatpush.msra.mxu0 0.0
    %183 = vmatpush.msra.mxu0 0.0
    %184 = vmatpush.msra.mxu0 0.0
    %185 = vmatpush.msra.mxu0 0.0
    %186 = vmatpush.msra.mxu0 0.0
    %187 = vmatpush.msra.mxu0 %v125
    %188 = vmatpush.msra.mxu0 %v123
    %189 = vmatpush.msra.mxu0 %v121
    %190 = vmatpush.msra.mxu0 %v119
    %191 = vmatpush.msra.mxu0 %v117
    %192 = vmatpush.msra.mxu0 %v115
    %193 = vmatpush.msra.mxu0 %v113
    %194 = vmatpush.msra.mxu0 %v111
    %195 = vmatmul.f32.gmra.mxu0 %v177
    %v196 = vpop.f32.mrf.mxu0
    %v197 = vadd.f32 0.0, %v196
    %198 = vdwg.mxu0
    %199 = vmatpush.msra.mxu0 0.0
    %200 = vmatpush.msra.mxu0 0.0
    %201 = vmatpush.msra.mxu0 0.0
    %202 = vmatpush.msra.mxu0 0.0
    %203 = vmatpush.msra.mxu0 0.0
    %204 = vmatpush.msra.mxu0 0.0
    %205 = vmatpush.msra.mxu0 0.0
    %206 = vmatpush.msra.mxu0 0.0
    %207 = vmatpush.msra.mxu0 %v126
    %208 = vmatpush.msra.mxu0 %v124
    %209 = vmatpush.msra.mxu0 %v122
    %210 = vmatpush.msra.mxu0 %v120
    %211 = vmatpush.msra.mxu0 %v118
    %212 = vmatpush.msra.mxu0 %v116
    %213 = vmatpush.msra.mxu0 %v114
    %214 = vmatpush.msra.mxu0 %v112
    %215 = vmatmul.f32.gmra.mxu0 %v177
    %v216 = vpop.f32.mrf.mxu0
    %v217 = vadd.f32 0.0, %v216
    %218 = vdwg.mxu0
    %v219 = vadd.f32 %v217, %v127
    %v220 = vxor.u32 %v219, 2147483648
    %v221 = vmul.f32 %v220, 1.442695
    %v222 = vpow.pop %v221
    %v223 = vadd.f32 %v222, 1.0
    %v224 = vrcp.pop %v223
    %v225 = vmul.f32 %v223, %v224
    %v226 = vsub.f32 1.0, %v225
    %v227 = vmul.f32 %v224, %v226
    %v228 = vadd.f32 %v224, %v227
    %vm229 = vweird.f32 %v223
    %vm230 = vweird.f32 %v224
    %vm231 = vmor %vm229, %vm230
    %v232 = vsel %vm231, %v224, %v228
    %v233 = vand.u32 2147483647, %v223
    %vm234 = vcmp.eq.f32.partialorder %v233, 8.507059e+37
    %v235 = vand.u32 %v223, 2147483648
    %v236 = vor.u32 1.1754944e-38, %v235
    %v237 = vsel %vm234, %v236, %v232
    %v238 = vmul.f32 1.0, %v237
    %v239 = vtanh.pop %v219
    %v240 = vmul.f32 %v238, 0.0
    %242 = vrot.lane.b32.xlu0 %v239, 64
    %v243 = vpop.permute.xlu0 %242
    %v245 = vmul.f32 %v238, %v243
    %247 = vrot.lane.b32.xlu0 %v245, 32
    %v248 = vpop.permute.xlu0 %247
    %v250 = vadd.f32 %v240, %v248
    %v251 = vtanh.pop %v250
    %253 = vrot.lane.b32.xlu0 %v251, 64
    %v254 = vpop.permute.xlu0 %253
    %v256 = vmul.f32 %v238, %v254
    %258 = vrot.lane.b32.xlu0 %v256, 64
    %v259 = vpop.permute.xlu0 %258
    %vm261 = vcmask 523520
    %262 = vst.msk [vmem:[#allocation3] sm:$0xff] %vm261, %v259
    %v263 = vld [vmem:[#allocation2 + $0x8] sm:$0xff]
    %v264 = vadd.f32 %v263, %v197
    %v265 = vxor.u32 %v264, 2147483648
    %v266 = vmul.f32 %v265, 1.442695
    %v267 = vpow.pop %v266
    %v268 = vadd.f32 %v267, 1.0
    %v269 = vrcp.pop %v268
    %v270 = vmul.f32 %v268, %v269
    %v271 = vsub.f32 1.0, %v270
    %v272 = vmul.f32 %v269, %v271
    %v273 = vadd.f32 %v269, %v272
    %vm274 = vweird.f32 %v268
    %vm275 = vweird.f32 %v269
    %vm276 = vmor %vm274, %vm275
    %v277 = vsel %vm276, %v269, %v273
    %v278 = vand.u32 2147483647, %v268
    %vm279 = vcmp.eq.f32.partialorder %v278, 8.507059e+37
    %v280 = vand.u32 %v268, 2147483648
    %v281 = vor.u32 1.1754944e-38, %v280
    %v282 = vsel %vm279, %v281, %v277
    %v283 = vmul.f32 1.0, %v282
    %v284 = vtanh.pop %v264
    %v285 = vmul.f32 %v283, %v162
    %287 = vrot.lane.b32.xlu0 %v284, 64
    %v288 = vpop.permute.xlu0 %287
    %v290 = vmul.f32 %v283, %v288
    %292 = vrot.lane.b32.xlu0 %v290, 32
    %v293 = vpop.permute.xlu0 %292
    %v295 = vadd.f32 %v285, %v293
    %v296 = vtanh.pop %v295
    %298 = vrot.lane.b32.xlu0 %v296, 64
    %v299 = vpop.permute.xlu0 %298
    %v301 = vmul.f32 %v283, %v299
    %303 = vrot.lane.b32.xlu0 %v301, 32
    %v304 = vpop.permute.xlu0 %303
    %306 = vst.msk [vmem:[#allocation3] sm:$0xff] %vm173, %v304
    %v307 = vld [vmem:[#allocation3] sm:$0xff]
    %v309 = vsel %vm128, %v307, 0
    %311 = vmatpush.msra.mxu0 0.0
    %312 = vmatpush.msra.mxu0 0.0
    %313 = vmatpush.msra.mxu0 0.0
    %314 = vmatpush.msra.mxu0 0.0
    %315 = vmatpush.msra.mxu0 0.0
    %316 = vmatpush.msra.mxu0 0.0
    %317 = vmatpush.msra.mxu0 0.0
    %318 = vmatpush.msra.mxu0 0.0
    %319 = vmatpush.msra.mxu0 %v125
    %320 = vmatpush.msra.mxu0 %v123
    %321 = vmatpush.msra.mxu0 %v121
    %322 = vmatpush.msra.mxu0 %v119
    %323 = vmatpush.msra.mxu0 %v117
    %324 = vmatpush.msra.mxu0 %v115
    %325 = vmatpush.msra.mxu0 %v113
    %326 = vmatpush.msra.mxu0 %v111
    %327 = vmatmul.f32.gmra.mxu0 %v309
    %v328 = vpop.f32.mrf.mxu0
    %v329 = vadd.f32 0.0, %v328
    %330 = vdwg.mxu0
    %331 = vmatpush.msra.mxu0 0.0
    %332 = vmatpush.msra.mxu0 0.0
    %333 = vmatpush.msra.mxu0 0.0
    %334 = vmatpush.msra.mxu0 0.0
    %335 = vmatpush.msra.mxu0 0.0
    %336 = vmatpush.msra.mxu0 0.0
    %337 = vmatpush.msra.mxu0 0.0
    %338 = vmatpush.msra.mxu0 0.0
    %339 = vmatpush.msra.mxu0 %v126
    %340 = vmatpush.msra.mxu0 %v124
    %341 = vmatpush.msra.mxu0 %v122
    %342 = vmatpush.msra.mxu0 %v120
    %343 = vmatpush.msra.mxu0 %v118
    %344 = vmatpush.msra.mxu0 %v116
    %345 = vmatpush.msra.mxu0 %v114
    %346 = vmatpush.msra.mxu0 %v112
    %347 = vmatmul.f32.gmra.mxu0 %v309
    %v348 = vpop.f32.mrf.mxu0
    %v349 = vadd.f32 0.0, %v348
    %350 = vdwg.mxu0
    %v351 = vadd.f32 %v349, %v127
    %v352 = vxor.u32 %v351, 2147483648
    %v353 = vmul.f32 %v352, 1.442695
    %v354 = vpow.pop %v353
    %v355 = vadd.f32 %v354, 1.0
    %v356 = vrcp.pop %v355
    %v357 = vmul.f32 %v355, %v356
    %v358 = vsub.f32 1.0, %v357
    %v359 = vmul.f32 %v356, %v358
    %v360 = vadd.f32 %v356, %v359
    %vm361 = vweird.f32 %v355
    %vm362 = vweird.f32 %v356
    %vm363 = vmor %vm361, %vm362
    %v364 = vsel %vm363, %v356, %v360
    %v365 = vand.u32 2147483647, %v355
    %vm366 = vcmp.eq.f32.partialorder %v365, 8.507059e+37
    %v367 = vand.u32 %v355, 2147483648
    %v368 = vor.u32 1.1754944e-38, %v367
    %v369 = vsel %vm366, %v368, %v364
    %v370 = vmul.f32 1.0, %v369
    %v371 = vtanh.pop %v351
    %v372 = vmul.f32 %v370, %v250
    %374 = vrot.lane.b32.xlu0 %v371, 64
    %v375 = vpop.permute.xlu0 %374
    %v377 = vmul.f32 %v370, %v375
    %379 = vrot.lane.b32.xlu0 %v377, 32
    %v380 = vpop.permute.xlu0 %379
    %v382 = vadd.f32 %v372, %v380
    %v383 = vtanh.pop %v382
    %385 = vrot.lane.b32.xlu0 %v383, 64
    %v386 = vpop.permute.xlu0 %385
    %v388 = vmul.f32 %v370, %v386
    %390 = vrot.lane.b32.xlu0 %v388, 64
    %v391 = vpop.permute.xlu0 %390
    %393 = vst.msk [vmem:[#allocation3] sm:$0xff] %vm261, %v391
    %v394 = vld [vmem:[#allocation2 + $0x10] sm:$0xff]
    %v395 = vadd.f32 %v394, %v329
    %v396 = vxor.u32 %v395, 2147483648
    %v397 = vmul.f32 %v396, 1.442695
    %v398 = vpow.pop %v397
    %v399 = vadd.f32 %v398, 1.0
    %v400 = vrcp.pop %v399
    %v401 = vmul.f32 %v399, %v400
    %v402 = vsub.f32 1.0, %v401
    %v403 = vmul.f32 %v400, %v402
    %v404 = vadd.f32 %v400, %v403
    %vm405 = vweird.f32 %v399
    %vm406 = vweird.f32 %v400
    %vm407 = vmor %vm405, %vm406
    %v408 = vsel %vm407, %v400, %v404
    %v409 = vand.u32 2147483647, %v399
    %vm410 = vcmp.eq.f32.partialorder %v409, 8.507059e+37
    %v411 = vand.u32 %v399, 2147483648
    %v412 = vor.u32 1.1754944e-38, %v411
    %v413 = vsel %vm410, %v412, %v408
    %v414 = vmul.f32 1.0, %v413
    %v415 = vtanh.pop %v395
    %v416 = vmul.f32 %v414, %v295
    %418 = vrot.lane.b32.xlu0 %v415, 64
    %v419 = vpop.permute.xlu0 %418
    %v421 = vmul.f32 %v414, %v419
    %423 = vrot.lane.b32.xlu0 %v421, 32
    %v424 = vpop.permute.xlu0 %423
    %v426 = vadd.f32 %v416, %v424
    %v427 = vtanh.pop %v426
    %429 = vrot.lane.b32.xlu0 %v427, 64
    %v430 = vpop.permute.xlu0 %429
    %v432 = vmul.f32 %v414, %v430
    %434 = vrot.lane.b32.xlu0 %v432, 32
    %v435 = vpop.permute.xlu0 %434
    %437 = vst.msk [vmem:[#allocation3] sm:$0xff] %vm173, %v435
    %v438 = vld [vmem:[#allocation3] sm:$0xff]
    %v440 = vsel %vm128, %v438, 0
    %442 = vmatpush.msra.mxu0 0.0
    %443 = vmatpush.msra.mxu0 0.0
    %444 = vmatpush.msra.mxu0 0.0
    %445 = vmatpush.msra.mxu0 0.0
    %446 = vmatpush.msra.mxu0 0.0
    %447 = vmatpush.msra.mxu0 0.0
    %448 = vmatpush.msra.mxu0 0.0
    %449 = vmatpush.msra.mxu0 0.0
    %450 = vmatpush.msra.mxu0 %v125
    %451 = vmatpush.msra.mxu0 %v123
    %452 = vmatpush.msra.mxu0 %v121
    %453 = vmatpush.msra.mxu0 %v119
    %454 = vmatpush.msra.mxu0 %v117
    %455 = vmatpush.msra.mxu0 %v115
    %456 = vmatpush.msra.mxu0 %v113
    %457 = vmatpush.msra.mxu0 %v111
    %458 = vmatmul.f32.gmra.mxu0 %v440
    %v459 = vpop.f32.mrf.mxu0
    %v460 = vadd.f32 0.0, %v459
    %461 = vdwg.mxu0
    %462 = vmatpush.msra.mxu0 0.0
    %463 = vmatpush.msra.mxu0 0.0
    %464 = vmatpush.msra.mxu0 0.0
    %465 = vmatpush.msra.mxu0 0.0
    %466 = vmatpush.msra.mxu0 0.0
    %467 = vmatpush.msra.mxu0 0.0
    %468 = vmatpush.msra.mxu0 0.0
    %469 = vmatpush.msra.mxu0 0.0
    %470 = vmatpush.msra.mxu0 %v126
    %471 = vmatpush.msra.mxu0 %v124
    %472 = vmatpush.msra.mxu0 %v122
    %473 = vmatpush.msra.mxu0 %v120
    %474 = vmatpush.msra.mxu0 %v118
    %475 = vmatpush.msra.mxu0 %v116
    %476 = vmatpush.msra.mxu0 %v114
    %477 = vmatpush.msra.mxu0 %v112
    %478 = vmatmul.f32.gmra.mxu0 %v440
    %v479 = vpop.f32.mrf.mxu0
    %v480 = vadd.f32 0.0, %v479
    %481 = vdwg.mxu0
    %v482 = vadd.f32 %v480, %v127
    %v483 = vxor.u32 %v482, 2147483648
    %v484 = vmul.f32 %v483, 1.442695
    %v485 = vpow.pop %v484
    %v486 = vadd.f32 %v485, 1.0
    %v487 = vrcp.pop %v486
    %v488 = vmul.f32 %v486, %v487
    %v489 = vsub.f32 1.0, %v488
    %v490 = vmul.f32 %v487, %v489
    %v491 = vadd.f32 %v487, %v490
    %vm492 = vweird.f32 %v486
    %vm493 = vweird.f32 %v487
    %vm494 = vmor %vm492, %vm493
    %v495 = vsel %vm494, %v487, %v491
    %v496 = vand.u32 2147483647, %v486
    %vm497 = vcmp.eq.f32.partialorder %v496, 8.507059e+37
    %v498 = vand.u32 %v486, 2147483648
    %v499 = vor.u32 1.1754944e-38, %v498
    %v500 = vsel %vm497, %v499, %v495
    %v501 = vmul.f32 1.0, %v500
    %v502 = vtanh.pop %v482
    %v503 = vmul.f32 %v501, %v382
    %505 = vrot.lane.b32.xlu0 %v502, 64
    %v506 = vpop.permute.xlu0 %505
    %v508 = vmul.f32 %v501, %v506
    %510 = vrot.lane.b32.xlu0 %v508, 32
    %v511 = vpop.permute.xlu0 %510
    %v513 = vadd.f32 %v503, %v511
    %v514 = vtanh.pop %v513
    %516 = vrot.lane.b32.xlu0 %v514, 64
    %v517 = vpop.permute.xlu0 %516
    %v519 = vmul.f32 %v501, %v517
    %521 = vrot.lane.b32.xlu0 %v519, 64
    %v522 = vpop.permute.xlu0 %521
    %524 = vst.msk [vmem:[#allocation3] sm:$0xff] %vm261, %v522
    %v525 = vld [vmem:[#allocation2 + $0x18] sm:$0xff]
    %v526 = vadd.f32 %v525, %v460
    %v527 = vxor.u32 %v526, 2147483648
    %v528 = vmul.f32 %v527, 1.442695
    %v529 = vpow.pop %v528
    %v530 = vadd.f32 %v529, 1.0
    %v531 = vrcp.pop %v530
    %v532 = vmul.f32 %v530, %v531
    %v533 = vsub.f32 1.0, %v532
    %v534 = vmul.f32 %v531, %v533
    %v535 = vadd.f32 %v531, %v534
    %vm536 = vweird.f32 %v530
    %vm537 = vweird.f32 %v531
    %vm538 = vmor %vm536, %vm537
    %v539 = vsel %vm538, %v531, %v535
    %v540 = vand.u32 2147483647, %v530
    %vm541 = vcmp.eq.f32.partialorder %v540, 8.507059e+37
    %v542 = vand.u32 %v530, 2147483648
    %v543 = vor.u32 1.1754944e-38, %v542
    %v544 = vsel %vm541, %v543, %v539
    %v545 = vmul.f32 1.0, %v544
    %v546 = vtanh.pop %v526
    %v547 = vmul.f32 %v545, %v426
    %549 = vrot.lane.b32.xlu0 %v546, 64
    %v550 = vpop.permute.xlu0 %549
    %v552 = vmul.f32 %v545, %v550
    %554 = vrot.lane.b32.xlu0 %v552, 32
    %v555 = vpop.permute.xlu0 %554
    %v557 = vadd.f32 %v547, %v555
    %v558 = vtanh.pop %v557
    %560 = vrot.lane.b32.xlu0 %v558, 64
    %v561 = vpop.permute.xlu0 %560
    %v563 = vmul.f32 %v545, %v561
    %565 = vrot.lane.b32.xlu0 %v563, 32
    %v566 = vpop.permute.xlu0 %565
    %568 = vst.msk [vmem:[#allocation3] sm:$0xff] %vm173, %v566
    %v569 = vld [vmem:[#allocation3] sm:$0xff]
    %v571 = vsel %vm128, %v569, 0
    %573 = vmatpush.msra.mxu0 0.0
    %574 = vmatpush.msra.mxu0 0.0
    %575 = vmatpush.msra.mxu0 0.0
    %576 = vmatpush.msra.mxu0 0.0
    %577 = vmatpush.msra.mxu0 0.0
    %578 = vmatpush.msra.mxu0 0.0
    %579 = vmatpush.msra.mxu0 0.0
    %580 = vmatpush.msra.mxu0 0.0
    %581 = vmatpush.msra.mxu0 %v125
    %582 = vmatpush.msra.mxu0 %v123
    %583 = vmatpush.msra.mxu0 %v121
    %584 = vmatpush.msra.mxu0 %v119
    %585 = vmatpush.msra.mxu0 %v117
    %586 = vmatpush.msra.mxu0 %v115
    %587 = vmatpush.msra.mxu0 %v113
    %588 = vmatpush.msra.mxu0 %v111
    %589 = vmatmul.f32.gmra.mxu0 %v571
    %v590 = vpop.f32.mrf.mxu0
    %v591 = vadd.f32 0.0, %v590
    %592 = vdwg.mxu0
    %593 = vmatpush.msra.mxu0 0.0
    %594 = vmatpush.msra.mxu0 0.0
    %595 = vmatpush.msra.mxu0 0.0
    %596 = vmatpush.msra.mxu0 0.0
    %597 = vmatpush.msra.mxu0 0.0
    %598 = vmatpush.msra.mxu0 0.0
    %599 = vmatpush.msra.mxu0 0.0
    %600 = vmatpush.msra.mxu0 0.0
    %601 = vmatpush.msra.mxu0 %v126
    %602 = vmatpush.msra.mxu0 %v124
    %603 = vmatpush.msra.mxu0 %v122
    %604 = vmatpush.msra.mxu0 %v120
    %605 = vmatpush.msra.mxu0 %v118
    %606 = vmatpush.msra.mxu0 %v116
    %607 = vmatpush.msra.mxu0 %v114
    %608 = vmatpush.msra.mxu0 %v112
    %609 = vmatmul.f32.gmra.mxu0 %v571
    %v610 = vpop.f32.mrf.mxu0
    %v611 = vadd.f32 0.0, %v610
    %612 = vdwg.mxu0
    %v613 = vadd.f32 %v611, %v127
    %v614 = vxor.u32 %v613, 2147483648
    %v615 = vmul.f32 %v614, 1.442695
    %v616 = vpow.pop %v615
    %v617 = vadd.f32 %v616, 1.0
    %v618 = vrcp.pop %v617
    %v619 = vmul.f32 %v617, %v618
    %v620 = vsub.f32 1.0, %v619
    %v621 = vmul.f32 %v618, %v620
    %v622 = vadd.f32 %v618, %v621
    %vm623 = vweird.f32 %v617
    %vm624 = vweird.f32 %v618
    %vm625 = vmor %vm623, %vm624
    %v626 = vsel %vm625, %v618, %v622
    %v627 = vand.u32 2147483647, %v617
    %vm628 = vcmp.eq.f32.partialorder %v627, 8.507059e+37
    %v629 = vand.u32 %v617, 2147483648
    %v630 = vor.u32 1.1754944e-38, %v629
    %v631 = vsel %vm628, %v630, %v626
    %v632 = vmul.f32 1.0, %v631
    %v633 = vtanh.pop %v613
    %v634 = vmul.f32 %v632, %v513
    %636 = vrot.lane.b32.xlu0 %v633, 64
    %v637 = vpop.permute.xlu0 %636
    %v639 = vmul.f32 %v632, %v637
    %641 = vrot.lane.b32.xlu0 %v639, 32
    %v642 = vpop.permute.xlu0 %641
    %v644 = vadd.f32 %v634, %v642
    %v645 = vtanh.pop %v644
    %647 = vrot.lane.b32.xlu0 %v645, 64
    %v648 = vpop.permute.xlu0 %647
    %v650 = vmul.f32 %v632, %v648
    %652 = vrot.lane.b32.xlu0 %v650, 64
    %v653 = vpop.permute.xlu0 %652
    %655 = vst.msk [vmem:[#allocation3] sm:$0xff] %vm261, %v653
    %v656 = vld [vmem:[#allocation2 + $0x20] sm:$0xff]
    %v657 = vadd.f32 %v656, %v591
    %v658 = vxor.u32 %v657, 2147483648
    %v659 = vmul.f32 %v658, 1.442695
    %v660 = vpow.pop %v659
    %v661 = vadd.f32 %v660, 1.0
    %v662 = vrcp.pop %v661
    %v663 = vmul.f32 %v661, %v662
    %v664 = vsub.f32 1.0, %v663
    %v665 = vmul.f32 %v662, %v664
    %v666 = vadd.f32 %v662, %v665
    %vm667 = vweird.f32 %v661
    %vm668 = vweird.f32 %v662
    %vm669 = vmor %vm667, %vm668
    %v670 = vsel %vm669, %v662, %v666
    %v671 = vand.u32 2147483647, %v661
    %vm672 = vcmp.eq.f32.partialorder %v671, 8.507059e+37
    %v673 = vand.u32 %v661, 2147483648
    %v674 = vor.u32 1.1754944e-38, %v673
    %v675 = vsel %vm672, %v674, %v670
    %v676 = vmul.f32 1.0, %v675
    %v677 = vtanh.pop %v657
    %v678 = vmul.f32 %v676, %v557
    %680 = vrot.lane.b32.xlu0 %v677, 64
    %v681 = vpop.permute.xlu0 %680
    %v683 = vmul.f32 %v676, %v681
    %685 = vrot.lane.b32.xlu0 %v683, 32
    %v686 = vpop.permute.xlu0 %685
    %v688 = vadd.f32 %v678, %v686
    %v689 = vtanh.pop %v688
    %691 = vrot.lane.b32.xlu0 %v689, 64
    %v692 = vpop.permute.xlu0 %691
    %v694 = vmul.f32 %v676, %v692
    %696 = vrot.lane.b32.xlu0 %v694, 32
    %v697 = vpop.permute.xlu0 %696
    %699 = vst.msk [vmem:[#allocation3] sm:$0xff] %vm173, %v697
    %v700 = vld [vmem:[#allocation3] sm:$0xff]
    %v702 = vsel %vm128, %v700, 0
    %704 = vmatpush.msra.mxu0 0.0
    %705 = vmatpush.msra.mxu0 0.0
    %706 = vmatpush.msra.mxu0 0.0
    %707 = vmatpush.msra.mxu0 0.0
    %708 = vmatpush.msra.mxu0 0.0
    %709 = vmatpush.msra.mxu0 0.0
    %710 = vmatpush.msra.mxu0 0.0
    %711 = vmatpush.msra.mxu0 0.0
    %712 = vmatpush.msra.mxu0 %v125
    %713 = vmatpush.msra.mxu0 %v123
    %714 = vmatpush.msra.mxu0 %v121
    %715 = vmatpush.msra.mxu0 %v119
    %716 = vmatpush.msra.mxu0 %v117
    %717 = vmatpush.msra.mxu0 %v115
    %718 = vmatpush.msra.mxu0 %v113
    %719 = vmatpush.msra.mxu0 %v111
    %720 = vmatmul.f32.gmra.mxu0 %v702
    %v721 = vpop.f32.mrf.mxu0
    %v722 = vadd.f32 0.0, %v721
    %723 = vdwg.mxu0
    %724 = vmatpush.msra.mxu0 0.0
    %725 = vmatpush.msra.mxu0 0.0
    %726 = vmatpush.msra.mxu0 0.0
    %727 = vmatpush.msra.mxu0 0.0
    %728 = vmatpush.msra.mxu0 0.0
    %729 = vmatpush.msra.mxu0 0.0
    %730 = vmatpush.msra.mxu0 0.0
    %731 = vmatpush.msra.mxu0 0.0
    %732 = vmatpush.msra.mxu0 %v126
    %733 = vmatpush.msra.mxu0 %v124
    %734 = vmatpush.msra.mxu0 %v122
    %735 = vmatpush.msra.mxu0 %v120
    %736 = vmatpush.msra.mxu0 %v118
    %737 = vmatpush.msra.mxu0 %v116
    %738 = vmatpush.msra.mxu0 %v114
    %739 = vmatpush.msra.mxu0 %v112
    %740 = vmatmul.f32.gmra.mxu0 %v702
    %v741 = vpop.f32.mrf.mxu0
    %v742 = vadd.f32 0.0, %v741
    %743 = vdwg.mxu0
    %v744 = vadd.f32 %v742, %v127
    %v745 = vxor.u32 %v744, 2147483648
    %v746 = vmul.f32 %v745, 1.442695
    %v747 = vpow.pop %v746
    %v748 = vadd.f32 %v747, 1.0
    %v749 = vrcp.pop %v748
    %v750 = vmul.f32 %v748, %v749
    %v751 = vsub.f32 1.0, %v750
    %v752 = vmul.f32 %v749, %v751
    %v753 = vadd.f32 %v749, %v752
    %vm754 = vweird.f32 %v748
    %vm755 = vweird.f32 %v749
    %vm756 = vmor %vm754, %vm755
    %v757 = vsel %vm756, %v749, %v753
    %v758 = vand.u32 2147483647, %v748
    %vm759 = vcmp.eq.f32.partialorder %v758, 8.507059e+37
    %v760 = vand.u32 %v748, 2147483648
    %v761 = vor.u32 1.1754944e-38, %v760
    %v762 = vsel %vm759, %v761, %v757
    %v763 = vmul.f32 1.0, %v762
    %v764 = vtanh.pop %v744
    %v765 = vmul.f32 %v763, %v644
    %767 = vrot.lane.b32.xlu0 %v764, 64
    %v768 = vpop.permute.xlu0 %767
    %v770 = vmul.f32 %v763, %v768
    %772 = vrot.lane.b32.xlu0 %v770, 32
    %v773 = vpop.permute.xlu0 %772
    %v775 = vadd.f32 %v765, %v773
    %v776 = vtanh.pop %v775
    %778 = vrot.lane.b32.xlu0 %v776, 64
    %v779 = vpop.permute.xlu0 %778
    %v781 = vmul.f32 %v763, %v779
    %783 = vrot.lane.b32.xlu0 %v781, 64
    %v784 = vpop.permute.xlu0 %783
    %786 = vst.msk [vmem:[#allocation3] sm:$0xff] %vm261, %v784
    %v787 = vld [vmem:[#allocation2 + $0x28] sm:$0xff]
    %v788 = vadd.f32 %v787, %v722
    %v789 = vxor.u32 %v788, 2147483648
    %v790 = vmul.f32 %v789, 1.442695
    %v791 = vpow.pop %v790
    %v792 = vadd.f32 %v791, 1.0
    %v793 = vrcp.pop %v792
    %v794 = vmul.f32 %v792, %v793
    %v795 = vsub.f32 1.0, %v794
    %v796 = vmul.f32 %v793, %v795
    %v797 = vadd.f32 %v793, %v796
    %vm798 = vweird.f32 %v792
    %vm799 = vweird.f32 %v793
    %vm800 = vmor %vm798, %vm799
    %v801 = vsel %vm800, %v793, %v797
    %v802 = vand.u32 2147483647, %v792
    %vm803 = vcmp.eq.f32.partialorder %v802, 8.507059e+37
    %v804 = vand.u32 %v792, 2147483648
    %v805 = vor.u32 1.1754944e-38, %v804
    %v806 = vsel %vm803, %v805, %v801
    %v807 = vmul.f32 1.0, %v806
    %v808 = vtanh.pop %v788
    %v809 = vmul.f32 %v807, %v688
    %811 = vrot.lane.b32.xlu0 %v808, 64
    %v812 = vpop.permute.xlu0 %811
    %v814 = vmul.f32 %v807, %v812
    %816 = vrot.lane.b32.xlu0 %v814, 32
    %v817 = vpop.permute.xlu0 %816
    %v819 = vadd.f32 %v809, %v817
    %v820 = vtanh.pop %v819
    %822 = vrot.lane.b32.xlu0 %v820, 64
    %v823 = vpop.permute.xlu0 %822
    %v825 = vmul.f32 %v807, %v823
    %827 = vrot.lane.b32.xlu0 %v825, 32
    %v828 = vpop.permute.xlu0 %827
    %830 = vst.msk [vmem:[#allocation3] sm:$0xff] %vm173, %v828
    %v831 = vld [vmem:[#allocation3] sm:$0xff]
    %v833 = vsel %vm128, %v831, 0
    %835 = vmatpush.msra.mxu0 0.0
    %836 = vmatpush.msra.mxu0 0.0
    %837 = vmatpush.msra.mxu0 0.0
    %838 = vmatpush.msra.mxu0 0.0
    %839 = vmatpush.msra.mxu0 0.0
    %840 = vmatpush.msra.mxu0 0.0
    %841 = vmatpush.msra.mxu0 0.0
    %842 = vmatpush.msra.mxu0 0.0
    %843 = vmatpush.msra.mxu0 %v125
    %844 = vmatpush.msra.mxu0 %v123
    %845 = vmatpush.msra.mxu0 %v121
    %846 = vmatpush.msra.mxu0 %v119
    %847 = vmatpush.msra.mxu0 %v117
    %848 = vmatpush.msra.mxu0 %v115
    %849 = vmatpush.msra.mxu0 %v113
    %850 = vmatpush.msra.mxu0 %v111
    %851 = vmatmul.f32.gmra.mxu0 %v833
    %v852 = vpop.f32.mrf.mxu0
    %v853 = vadd.f32 0.0, %v852
    %854 = vdwg.mxu0
    %855 = vmatpush.msra.mxu0 0.0
    %856 = vmatpush.msra.mxu0 0.0
    %857 = vmatpush.msra.mxu0 0.0
    %858 = vmatpush.msra.mxu0 0.0
    %859 = vmatpush.msra.mxu0 0.0
    %860 = vmatpush.msra.mxu0 0.0
    %861 = vmatpush.msra.mxu0 0.0
    %862 = vmatpush.msra.mxu0 0.0
    %863 = vmatpush.msra.mxu0 %v126
    %864 = vmatpush.msra.mxu0 %v124
    %865 = vmatpush.msra.mxu0 %v122
    %866 = vmatpush.msra.mxu0 %v120
    %867 = vmatpush.msra.mxu0 %v118
    %868 = vmatpush.msra.mxu0 %v116
    %869 = vmatpush.msra.mxu0 %v114
    %870 = vmatpush.msra.mxu0 %v112
    %871 = vmatmul.f32.gmra.mxu0 %v833
    %v872 = vpop.f32.mrf.mxu0
    %v873 = vadd.f32 0.0, %v872
    %874 = vdwg.mxu0
    %v875 = vadd.f32 %v873, %v127
    %v876 = vxor.u32 %v875, 2147483648
    %v877 = vmul.f32 %v876, 1.442695
    %v878 = vpow.pop %v877
    %v879 = vadd.f32 %v878, 1.0
    %v880 = vrcp.pop %v879
    %v881 = vmul.f32 %v879, %v880
    %v882 = vsub.f32 1.0, %v881
    %v883 = vmul.f32 %v880, %v882
    %v884 = vadd.f32 %v880, %v883
    %vm885 = vweird.f32 %v879
    %vm886 = vweird.f32 %v880
    %vm887 = vmor %vm885, %vm886
    %v888 = vsel %vm887, %v880, %v884
    %v889 = vand.u32 2147483647, %v879
    %vm890 = vcmp.eq.f32.partialorder %v889, 8.507059e+37
    %v891 = vand.u32 %v879, 2147483648
    %v892 = vor.u32 1.1754944e-38, %v891
    %v893 = vsel %vm890, %v892, %v888
    %v894 = vmul.f32 1.0, %v893
    %v895 = vtanh.pop %v875
    %v896 = vmul.f32 %v894, %v775
    %898 = vrot.lane.b32.xlu0 %v895, 64
    %v899 = vpop.permute.xlu0 %898
    %v901 = vmul.f32 %v894, %v899
    %903 = vrot.lane.b32.xlu0 %v901, 32
    %v904 = vpop.permute.xlu0 %903
    %v906 = vadd.f32 %v896, %v904
    %v907 = vtanh.pop %v906
    %909 = vrot.lane.b32.xlu0 %v907, 64
    %v910 = vpop.permute.xlu0 %909
    %v912 = vmul.f32 %v894, %v910
    %914 = vrot.lane.b32.xlu0 %v912, 64
    %v915 = vpop.permute.xlu0 %914
    %917 = vst.msk [vmem:[#allocation3] sm:$0xff] %vm261, %v915
    %v918 = vld [vmem:[#allocation2 + $0x30] sm:$0xff]
    %v919 = vadd.f32 %v918, %v853
    %v920 = vxor.u32 %v919, 2147483648
    %v921 = vmul.f32 %v920, 1.442695
    %v922 = vpow.pop %v921
    %v923 = vadd.f32 %v922, 1.0
    %v924 = vrcp.pop %v923
    %v925 = vmul.f32 %v923, %v924
    %v926 = vsub.f32 1.0, %v925
    %v927 = vmul.f32 %v924, %v926
    %v928 = vadd.f32 %v924, %v927
    %vm929 = vweird.f32 %v923
    %vm930 = vweird.f32 %v924
    %vm931 = vmor %vm929, %vm930
    %v932 = vsel %vm931, %v924, %v928
    %v933 = vand.u32 2147483647, %v923
    %vm934 = vcmp.eq.f32.partialorder %v933, 8.507059e+37
    %v935 = vand.u32 %v923, 2147483648
    %v936 = vor.u32 1.1754944e-38, %v935
    %v937 = vsel %vm934, %v936, %v932
    %v938 = vmul.f32 1.0, %v937
    %v939 = vtanh.pop %v919
    %v940 = vmul.f32 %v938, %v819
    %942 = vrot.lane.b32.xlu0 %v939, 64
    %v943 = vpop.permute.xlu0 %942
    %v945 = vmul.f32 %v938, %v943
    %947 = vrot.lane.b32.xlu0 %v945, 32
    %v948 = vpop.permute.xlu0 %947
    %v950 = vadd.f32 %v940, %v948
    %v951 = vtanh.pop %v950
    %953 = vrot.lane.b32.xlu0 %v951, 64
    %v954 = vpop.permute.xlu0 %953
    %v956 = vmul.f32 %v938, %v954
    %958 = vrot.lane.b32.xlu0 %v956, 32
    %v959 = vpop.permute.xlu0 %958
    %961 = vst.msk [vmem:[#allocation3] sm:$0xff] %vm173, %v959
    %v962 = vld [vmem:[#allocation3] sm:$0xff]
    %v964 = vsel %vm128, %v962, 0
    %966 = vmatpush.msra.mxu0 0.0
    %967 = vmatpush.msra.mxu0 0.0
    %968 = vmatpush.msra.mxu0 0.0
    %969 = vmatpush.msra.mxu0 0.0
    %970 = vmatpush.msra.mxu0 0.0
    %971 = vmatpush.msra.mxu0 0.0
    %972 = vmatpush.msra.mxu0 0.0
    %973 = vmatpush.msra.mxu0 0.0
    %974 = vmatpush.msra.mxu0 %v125
    %975 = vmatpush.msra.mxu0 %v123
    %976 = vmatpush.msra.mxu0 %v121
    %977 = vmatpush.msra.mxu0 %v119
    %978 = vmatpush.msra.mxu0 %v117
    %979 = vmatpush.msra.mxu0 %v115
    %980 = vmatpush.msra.mxu0 %v113
    %981 = vmatpush.msra.mxu0 %v111
    %982 = vmatmul.f32.gmra.mxu0 %v964
    %v983 = vpop.f32.mrf.mxu0
    %v984 = vadd.f32 0.0, %v983
    %985 = vdwg.mxu0
    %986 = vmatpush.msra.mxu0 0.0
    %987 = vmatpush.msra.mxu0 0.0
    %988 = vmatpush.msra.mxu0 0.0
    %989 = vmatpush.msra.mxu0 0.0
    %990 = vmatpush.msra.mxu0 0.0
    %991 = vmatpush.msra.mxu0 0.0
    %992 = vmatpush.msra.mxu0 0.0
    %993 = vmatpush.msra.mxu0 0.0
    %994 = vmatpush.msra.mxu0 %v126
    %995 = vmatpush.msra.mxu0 %v124
    %996 = vmatpush.msra.mxu0 %v122
    %997 = vmatpush.msra.mxu0 %v120
    %998 = vmatpush.msra.mxu0 %v118
    %999 = vmatpush.msra.mxu0 %v116
    %1000 = vmatpush.msra.mxu0 %v114
    %1001 = vmatpush.msra.mxu0 %v112
    %1002 = vmatmul.f32.gmra.mxu0 %v964
    %v1003 = vpop.f32.mrf.mxu0
    %v1004 = vadd.f32 0.0, %v1003
    %1005 = vdwg.mxu0
    %v1006 = vadd.f32 %v1004, %v127
    %v1007 = vxor.u32 %v1006, 2147483648
    %v1008 = vmul.f32 %v1007, 1.442695
    %v1009 = vpow.pop %v1008
    %v1010 = vadd.f32 %v1009, 1.0
    %v1011 = vrcp.pop %v1010
    %v1012 = vmul.f32 %v1010, %v1011
    %v1013 = vsub.f32 1.0, %v1012
    %v1014 = vmul.f32 %v1011, %v1013
    %v1015 = vadd.f32 %v1011, %v1014
    %vm1016 = vweird.f32 %v1010
    %vm1017 = vweird.f32 %v1011
    %vm1018 = vmor %vm1016, %vm1017
    %v1019 = vsel %vm1018, %v1011, %v1015
    %v1020 = vand.u32 2147483647, %v1010
    %vm1021 = vcmp.eq.f32.partialorder %v1020, 8.507059e+37
    %v1022 = vand.u32 %v1010, 2147483648
    %v1023 = vor.u32 1.1754944e-38, %v1022
    %v1024 = vsel %vm1021, %v1023, %v1019
    %v1025 = vmul.f32 1.0, %v1024
    %v1026 = vtanh.pop %v1006
    %v1027 = vmul.f32 %v1025, %v906
    %1029 = vrot.lane.b32.xlu0 %v1026, 64
    %v1030 = vpop.permute.xlu0 %1029
    %v1032 = vmul.f32 %v1025, %v1030
    %1034 = vrot.lane.b32.xlu0 %v1032, 32
    %v1035 = vpop.permute.xlu0 %1034
    %v1037 = vadd.f32 %v1027, %v1035
    %v1038 = vtanh.pop %v1037
    %1040 = vrot.lane.b32.xlu0 %v1038, 64
    %v1041 = vpop.permute.xlu0 %1040
    %v1043 = vmul.f32 %v1025, %v1041
    %1045 = vrot.lane.b32.xlu0 %v1043, 64
    %v1046 = vpop.permute.xlu0 %1045
    %1048 = vst.msk [vmem:[#allocation3] sm:$0xff] %vm261, %v1046
    %v1049 = vld [vmem:[#allocation2 + $0x38] sm:$0xff]
    %v1050 = vadd.f32 %v1049, %v984
    %v1051 = vxor.u32 %v1050, 2147483648
    %v1052 = vmul.f32 %v1051, 1.442695
    %v1053 = vpow.pop %v1052
    %v1054 = vadd.f32 %v1053, 1.0
    %v1055 = vrcp.pop %v1054
    %v1056 = vmul.f32 %v1054, %v1055
    %v1057 = vsub.f32 1.0, %v1056
    %v1058 = vmul.f32 %v1055, %v1057
    %v1059 = vadd.f32 %v1055, %v1058
    %vm1060 = vweird.f32 %v1054
    %vm1061 = vweird.f32 %v1055
    %vm1062 = vmor %vm1060, %vm1061
    %v1063 = vsel %vm1062, %v1055, %v1059
    %v1064 = vand.u32 2147483647, %v1054
    %vm1065 = vcmp.eq.f32.partialorder %v1064, 8.507059e+37
    %v1066 = vand.u32 %v1054, 2147483648
    %v1067 = vor.u32 1.1754944e-38, %v1066
    %v1068 = vsel %vm1065, %v1067, %v1063
    %v1069 = vmul.f32 1.0, %v1068
    %v1070 = vtanh.pop %v1050
    %v1071 = vmul.f32 %v1069, %v950
    %1073 = vrot.lane.b32.xlu0 %v1070, 64
    %v1074 = vpop.permute.xlu0 %1073
    %v1076 = vmul.f32 %v1069, %v1074
    %1078 = vrot.lane.b32.xlu0 %v1076, 32
    %v1079 = vpop.permute.xlu0 %1078
    %v1081 = vadd.f32 %v1071, %v1079
    %v1082 = vtanh.pop %v1081
    %1084 = vrot.lane.b32.xlu0 %v1082, 64
    %v1085 = vpop.permute.xlu0 %1084
    %v1087 = vmul.f32 %v1069, %v1085
    %1089 = vrot.lane.b32.xlu0 %v1087, 32
    %v1090 = vpop.permute.xlu0 %1089
    %1092 = vst.msk [vmem:[#allocation3] sm:$0xff] %vm173, %v1090
    %v1093 = vld [vmem:[#allocation3] sm:$0xff]
    %v1095 = vsel %vm128, %v1093, 0
    %1097 = vmatpush.msra.mxu0 0.0
    %1098 = vmatpush.msra.mxu0 0.0
    %1099 = vmatpush.msra.mxu0 0.0
    %1100 = vmatpush.msra.mxu0 0.0
    %1101 = vmatpush.msra.mxu0 0.0
    %1102 = vmatpush.msra.mxu0 0.0
    %1103 = vmatpush.msra.mxu0 0.0
    %1104 = vmatpush.msra.mxu0 0.0
    %1105 = vmatpush.msra.mxu0 %v126
    %1106 = vmatpush.msra.mxu0 %v124
    %1107 = vmatpush.msra.mxu0 %v122
    %1108 = vmatpush.msra.mxu0 %v120
    %1109 = vmatpush.msra.mxu0 %v118
    %1110 = vmatpush.msra.mxu0 %v116
    %1111 = vmatpush.msra.mxu0 %v114
    %1112 = vmatpush.msra.mxu0 %v112
    %1113 = vmatmul.f32.gmra.mxu0 %v1095
    %v1114 = vpop.f32.mrf.mxu0
    %v1115 = vadd.f32 0.0, %v1114
    %1116 = vdwg.mxu0
    %v1117 = vadd.f32 %v1115, %v127
    %v1118 = vxor.u32 %v1117, 2147483648
    %v1119 = vmul.f32 %v1118, 1.442695
    %v1120 = vpow.pop %v1119
    %v1121 = vadd.f32 %v1120, 1.0
    %v1122 = vrcp.pop %v1121
    %v1123 = vmul.f32 %v1121, %v1122
    %v1124 = vsub.f32 1.0, %v1123
    %v1125 = vmul.f32 %v1122, %v1124
    %v1126 = vadd.f32 %v1122, %v1125
    %vm1127 = vweird.f32 %v1121
    %vm1128 = vweird.f32 %v1122
    %vm1129 = vmor %vm1127, %vm1128
    %v1130 = vsel %vm1129, %v1122, %v1126
    %v1131 = vand.u32 2147483647, %v1121
    %vm1132 = vcmp.eq.f32.partialorder %v1131, 8.507059e+37
    %v1133 = vand.u32 %v1121, 2147483648
    %v1134 = vor.u32 1.1754944e-38, %v1133
    %v1135 = vsel %vm1132, %v1134, %v1130
    %v1136 = vmul.f32 1.0, %v1135
    %v1137 = vtanh.pop %v1117
    %v1138 = vmul.f32 %v1136, %v1037
    %1140 = vrot.lane.b32.xlu0 %v1137, 64
    %v1141 = vpop.permute.xlu0 %1140
    %v1143 = vmul.f32 %v1136, %v1141
    %1145 = vrot.lane.b32.xlu0 %v1143, 32
    %v1146 = vpop.permute.xlu0 %1145
    %v1148 = vadd.f32 %v1138, %v1146
    %v1149 = vtanh.pop %v1148
    %1151 = vrot.lane.b32.xlu0 %v1149, 64
    %v1152 = vpop.permute.xlu0 %1151
    %v1154 = vmul.f32 %v1136, %v1152
    %v1155 = vld [vmem:[#allocation4 + $0x90] sm:$0xff]
    %v1156 = vld [vmem:[#allocation4 + $0xa0] sm:$0xff]
    %v1157 = vld [vmem:[#allocation4 + $0xb0] sm:$0xff]
    %v1158 = vld [vmem:[#allocation4 + $0xc0] sm:$0xff]
    %v1159 = vld [vmem:[#allocation4 + $0x2f0] ss:$0 sm:$0xff]
    %v1160 = vld [vmem:[#allocation4 + $0xd0] sm:$0xff]
    %v1161 = vld [vmem:[#allocation4 + $0xe0] sm:$0xff]
    %v1162 = vld [vmem:[#allocation4 + $0xf0] sm:$0xff]
    %v1163 = vld [vmem:[#allocation4 + $0x100] sm:$0xff]
    %v1164 = vld [vmem:[#allocation4 + $0x110] sm:$0xff]
    %v1165 = vld [vmem:[#allocation4 + $0x120] sm:$0xff]
    %v1166 = vld [vmem:[#allocation4 + $0x130] sm:$0xff]
    %v1167 = vld [vmem:[#allocation4 + $0x140] sm:$0xff]
    %v1168 = vld [vmem:[#allocation4 + $0x150] sm:$0xff]
    %v1169 = vld [vmem:[#allocation4 + $0x160] sm:$0xff]
    %v1170 = vld [vmem:[#allocation4 + $0x170] sm:$0xff]
    %v1171 = vld [vmem:[#allocation4 + $0x180] sm:$0xff]
    %v1172 = vld [vmem:[#allocation4 + $0x190] sm:$0xff]
    %v1173 = vld [vmem:[#allocation4 + $0x1a0] sm:$0xff]
    %v1174 = vld [vmem:[#allocation4 + $0x1b0] sm:$0xff]
    %v1175 = vld [vmem:[#allocation4 + $0x1c0] sm:$0xff]
    %v1176 = vld [vmem:[#allocation4 + $0x300] ss:$0 sm:$0xff]
    %v1177 = vld [vmem:[#allocation4 + $0x1d0] sm:$0xff]
    %v1178 = vld [vmem:[#allocation4 + $0x1e0] sm:$0xff]
    %v1179 = vld [vmem:[#allocation4 + $0x1f0] sm:$0xff]
    %v1180 = vld [vmem:[#allocation4 + $0x200] sm:$0xff]
    %v1181 = vld [vmem:[#allocation4 + $0x210] sm:$0xff]
    %v1182 = vld [vmem:[#allocation4 + $0x220] sm:$0xff]
    %v1183 = vld [vmem:[#allocation4 + $0x230] sm:$0xff]
    %v1184 = vld [vmem:[#allocation4 + $0x240] sm:$0xff]
    %v1185 = vld [vmem:[#allocation4 + $0x250] sm:$0xff]
    %v1186 = vld [vmem:[#allocation4 + $0x260] sm:$0xff]
    %v1187 = vld [vmem:[#allocation4 + $0x270] sm:$0xff]
    %v1188 = vld [vmem:[#allocation4 + $0x280] sm:$0xff]
    %v1189 = vld [vmem:[#allocation4 + $0x290] sm:$0xff]
    %v1190 = vld [vmem:[#allocation4 + $0x2a0] sm:$0xff]
    %v1191 = vld [vmem:[#allocation4 + $0x2b0] sm:$0xff]
    %v1192 = vld [vmem:[#allocation4 + $0x2c0] sm:$0xff]
    %v1193 = vld [vmem:[#allocation4 + $0x310] ss:$0 sm:$0xff]
    %1195 = vrot.lane.b32.xlu0 %v1154, 32
    %v1196 = vpop.permute.xlu0 %1195
    %v1197 = vsel %vm173, %v1196, 0
    %1199 = vmatpush.msra.mxu0 0.0
    %1200 = vmatpush.msra.mxu0 0.0
    %1201 = vmatpush.msra.mxu0 0.0
    %1202 = vmatpush.msra.mxu0 0.0
    %1203 = vmatpush.msra.mxu0 0.0
    %1204 = vmatpush.msra.mxu0 0.0
    %1205 = vmatpush.msra.mxu0 0.0
    %1206 = vmatpush.msra.mxu0 0.0
    %1207 = vmatpush.msra.mxu0 0.0
    %1208 = vmatpush.msra.mxu0 0.0
    %1209 = vmatpush.msra.mxu0 0.0
    %1210 = vmatpush.msra.mxu0 0.0
    %1211 = vmatpush.msra.mxu0 %v1158
    %1212 = vmatpush.msra.mxu0 %v1157
    %1213 = vmatpush.msra.mxu0 %v1156
    %1214 = vmatpush.msra.mxu0 %v1155
    %1215 = vmatmul.f32.gmra.mxu0 %v1197
    %v1216 = vpop.f32.mrf.mxu0
    %v1217 = vadd.f32 %v1159, %v1216
    %1218 = vdwg.mxu0
    %v1219 = vmax.f32 %v1217, 0.0
    %1220 = vmatpush.msra.mxu0 %v1175
    %1221 = vmatpush.msra.mxu0 %v1174
    %1222 = vmatpush.msra.mxu0 %v1173
    %1223 = vmatpush.msra.mxu0 %v1172
    %1224 = vmatpush.msra.mxu0 %v1171
    %1225 = vmatpush.msra.mxu0 %v1170
    %1226 = vmatpush.msra.mxu0 %v1169
    %1227 = vmatpush.msra.mxu0 %v1168
    %1228 = vmatpush.msra.mxu0 %v1167
    %1229 = vmatpush.msra.mxu0 %v1166
    %1230 = vmatpush.msra.mxu0 %v1165
    %1231 = vmatpush.msra.mxu0 %v1164
    %1232 = vmatpush.msra.mxu0 %v1163
    %1233 = vmatpush.msra.mxu0 %v1162
    %1234 = vmatpush.msra.mxu0 %v1161
    %1235 = vmatpush.msra.mxu0 %v1160
    %1236 = vmatmul.f32.gmra.mxu0 %v1219
    %v1237 = vpop.f32.mrf.mxu0
    %v1238 = vadd.f32 %v1176, %v1237
    %1239 = vdwg.mxu0
    %v1240 = vmax.f32 %v1238, 0.0
    %1241 = vmatpush.msra.mxu0 %v1192
    %1242 = vmatpush.msra.mxu0 %v1191
    %1243 = vmatpush.msra.mxu0 %v1190
    %1244 = vmatpush.msra.mxu0 %v1189
    %1245 = vmatpush.msra.mxu0 %v1188
    %1246 = vmatpush.msra.mxu0 %v1187
    %1247 = vmatpush.msra.mxu0 %v1186
    %1248 = vmatpush.msra.mxu0 %v1185
    %1249 = vmatpush.msra.mxu0 %v1184
    %1250 = vmatpush.msra.mxu0 %v1183
    %1251 = vmatpush.msra.mxu0 %v1182
    %1252 = vmatpush.msra.mxu0 %v1181
    %1253 = vmatpush.msra.mxu0 %v1180
    %1254 = vmatpush.msra.mxu0 %v1179
    %1255 = vmatpush.msra.mxu0 %v1178
    %1256 = vmatpush.msra.mxu0 %v1177
    %1257 = vmatmul.f32.gmra.mxu0 %v1240
    %v1258 = vpop.f32.mrf.mxu0
    %v1259 = vadd.f32 %v1193, %v1258
    %1260 = vdwg.mxu0
    %1261 = vst [vmem:[%s2] sm:$0xff] %v1259
    // Predicated region
    $region14: #{forward.1} parent=1 // pred_check
      _
    $region15: #{forward.1} parent=1 // pred_check_branch
      %1263 = sbr.rel (0) target = $region17
    $region16: #{forward.1} parent=1 // pred_region
      _
    $region17: #{forward.1} parent=1 // pred_fallthru
      _
    // Predicated region
    $region18: #{forward.1} parent=1 // pred_check
      _
    $region19: #{forward.1} parent=1 // pred_check_branch
      %1265 = sbr.rel (0) target = $region21
    $region20: #{forward.1} parent=1 // pred_region
      _
    $region21: #{forward.1} parent=1 // pred_fallthru
      _
    %1266 = vsyncpa [#allocation5], 1

</llo_original>
